<compile_context>
chip_gen: v7x
topology: tpu7x:2x2x1
jax: 0.10.0
libtpu: 0.0.40
codegen_flags: <defaults>
</compile_context>

<pallas_src>
import jax
import jax.numpy as jnp
from jax.experimental import pallas as pl
from jax.experimental.pallas import tpu as pltpu


def _downconv_kernel(x_ref, m1_ref, b1_ref, m2_ref, b2_ref,
                     dsh_ref, ush_ref, re_ref, ro_ref, ce_ref, co_ref,
                     bp_ref, pool_ref):
    """All tensors use the lane-dense flat layout: (rows, width*channels)."""
    x = x_ref[...].astype(jnp.float32)                      # (H, W*Cin)
    dsh = dsh_ref[...]                                      # (H, H): (D @ a)[h] = a[h-1]
    ush = ush_ref[...]                                      # (H, H): (U @ a)[h] = a[h+1]

    def conv3x3_relu(inp, m_ref, b_ref):
        # dx taps + width zero-padding are folded into the banded weights m_ref[dy].
        a0 = jnp.dot(inp, m_ref[0], preferred_element_type=jnp.float32)
        a1 = jnp.dot(inp, m_ref[1], preferred_element_type=jnp.float32)
        a2 = jnp.dot(inp, m_ref[2], preferred_element_type=jnp.float32)
        # dy taps + height zero-padding via constant shift matmuls.
        y = (jnp.dot(dsh, a0, preferred_element_type=jnp.float32) + a1 +
             jnp.dot(ush, a2, preferred_element_type=jnp.float32) + b_ref[...])
        return jnp.maximum(y, 0.0)

    y1 = conv3x3_relu(x, m1_ref, b1_ref)                    # (H, W*Cout)
    y2 = conv3x3_relu(y1, m2_ref, b2_ref)                   # (H, W*Cout)

    bp_ref[...] = y2.astype(bp_ref.dtype)                   # lane-dense store

    # MaxPool2d(kernel=2, stride=2), entirely in registers.
    r_even = jnp.dot(re_ref[...], y2, preferred_element_type=jnp.float32)
    r_odd = jnp.dot(ro_ref[...], y2, preferred_element_type=jnp.float32)
    rmax = jnp.maximum(r_even, r_odd)                       # (H//2, W*Cout)
    c_even = jnp.dot(rmax, ce_ref[...], preferred_element_type=jnp.float32)
    c_odd = jnp.dot(rmax, co_ref[...], preferred_element_type=jnp.float32)
    pool_ref[...] = jnp.maximum(c_even, c_odd).astype(pool_ref.dtype)


def _banded_conv_weight(w_oihw, W):
    """torch weight (Cout, Cin, 3, 3) -> (3, W*Cin, W*Cout) banded matrices.

    M[dy][(w+dx-1)*Cin + ci, w*Cout + co] = weight[co, ci, dy, dx]; out-of-range
    width taps are simply absent, which implements 'same' zero padding in width.
    """
    wk = jnp.transpose(w_oihw, (2, 3, 1, 0)).astype(jnp.float32)  # (3, 3, Cin, Cout)
    rows = []
    for dy in range(3):
        m = sum(jnp.kron(jnp.eye(W, k=1 - dx, dtype=jnp.float32), wk[dy, dx])
                for dx in range(3))
        rows.append(m)
    return jnp.stack(rows)                                   # (3, W*Cin, W*Cout)


def down_conv(x_nchw, w1, b1, w2, b2):
    """Returns (pooled, before_pool), both NCHW, matching DownConv.forward."""
    N, Cin, H, W = x_nchw.shape
    Cout = w1.shape[0]
    assert H % 2 == 0 and W % 2 == 0
    f32 = jnp.float32

    # NCHW -> lane-dense flat NHWC: (N, H, W*Cin).  (No jnp.pad round trip.)
    x_flat = jnp.transpose(x_nchw, (0, 2, 3, 1)).reshape(N, H, W * Cin)

    m1 = _banded_conv_weight(w1, W)                          # (3, W*Cin,  W*Cout)
    m2 = _banded_conv_weight(w2, W)                          # (3, W*Cout, W*Cout)
    b1f = jnp.tile(b1.astype(f32), W).reshape(1, W * Cout)
    b2f = jnp.tile(b2.astype(f32), W).reshape(1, W * Cout)

    # Constant shift matrices for the kernel-row (dy) taps with zero padding.
    dsh = jnp.eye(H, k=-1, dtype=f32)
    ush = jnp.eye(H, k=1, dtype=f32)
    # Constant 0/1 selection matrices for the 2x2 pool.
    re = jnp.kron(jnp.eye(H // 2, dtype=f32), jnp.array([[1., 0.]], f32))  # rows 0,2,..
    ro = jnp.kron(jnp.eye(H // 2, dtype=f32), jnp.array([[0., 1.]], f32))  # rows 1,3,..
    sel_e = jnp.kron(jnp.eye(W // 2, dtype=f32), jnp.array([[1.], [0.]], f32))
    sel_o = jnp.kron(jnp.eye(W // 2, dtype=f32), jnp.array([[0.], [1.]], f32))
    ce = jnp.kron(sel_e, jnp.eye(Cout, dtype=f32))           # (W*Cout, (W//2)*Cout)
    co = jnp.kron(sel_o, jnp.eye(Cout, dtype=f32))

    def const_spec(shape):
        return pl.BlockSpec(shape, lambda n: (0,) * len(shape))

    grid_spec = pltpu.PrefetchScalarGridSpec(
        num_scalar_prefetch=0,
        grid=(N,),                                           # one grid step per image
        in_specs=[
            pl.BlockSpec((pl.Squeezed(), H, W * Cin), lambda n: (n, 0, 0)),
            const_spec((3, W * Cin, W * Cout)),
            const_spec((1, W * Cout)),
            const_spec((3, W * Cout, W * Cout)),
            const_spec((1, W * Cout)),
            const_spec((H, H)),
            const_spec((H, H)),
            const_spec((H // 2, H)),
            const_spec((H // 2, H)),
            const_spec((W * Cout, (W // 2) * Cout)),
            const_spec((W * Cout, (W // 2) * Cout)),
        ],
        out_specs=[
            pl.BlockSpec((pl.Squeezed(), H, W * Cout), lambda n: (n, 0, 0)),
            pl.BlockSpec((pl.Squeezed(), H // 2, (W // 2) * Cout),
                         lambda n: (n, 0, 0)),
        ],
    )

    before_flat, pool_flat = pl.pallas_call(
        _downconv_kernel,
        out_shape=(
            jax.ShapeDtypeStruct((N, H, W * Cout), x_nchw.dtype),
            jax.ShapeDtypeStruct((N, H // 2, (W // 2) * Cout), x_nchw.dtype),
        ),
        grid_spec=grid_spec,
        compiler_params=pltpu.CompilerParams(
            dimension_semantics=("parallel",)),              # batch is independent
    )(x_flat, m1, b1f, m2, b2f, dsh, ush, re, ro, ce, co)

    # flat NHWC -> NCHW
    before_nchw = jnp.transpose(before_flat.reshape(N, H, W, Cout), (0, 3, 1, 2))
    pooled_nchw = jnp.transpose(
        pool_flat.reshape(N, H // 2, W // 2, Cout), (0, 3, 1, 2))
    # TODO(synk): batch_norm branch not implemented (module default batch_norm=False).
    # TODO(synk): for large H/W/C, add halo'd row-block spatial tiling so the
    #             per-step working set / banded weights stay within VMEM.
    return pooled_nchw, before_nchw


if __name__ == "__main__":
    N, Cin, Cout, H, W = 2, 4, 8, 16, 16
    key = jax.random.PRNGKey(0)
    k1, k2, k3, k4, k5 = jax.random.split(key, 5)

    x = jax.random.normal(k1, (N, Cin, H, W), jnp.float32)
    # Deterministic synthetic params in torch Conv2d layout.
    w1 = jax.random.normal(k2, (Cout, Cin, 3, 3), jnp.float32) * 0.1
    b1 = jax.random.normal(k3, (Cout,), jnp.float32) * 0.1
    w2 = jax.random.normal(k4, (Cout, Cout, 3, 3), jnp.float32) * 0.1
    b2 = jax.random.normal(k5, (Cout,), jnp.float32) * 0.1

    pooled, before_pool = jax.jit(down_conv)(x, w1, b1, w2, b2)
    jax.block_until_ready((pooled, before_pool))

    # Pure-JAX reference (same semantics as the PyTorch module).
    def conv_relu(inp, w, b):
        y = jax.lax.conv_general_dilated(
            inp, w, window_strides=(1, 1), padding=((1, 1), (1, 1)),
            dimension_numbers=("NCHW", "OIHW", "NCHW"))
        return jnp.maximum(y + b[None, :, None, None], 0.0)

    ref_bp = conv_relu(conv_relu(x, w1, b1), w2, b2)
    ref_pool = jax.lax.reduce_window(ref_bp, -jnp.inf, jax.lax.max,
                                     (1, 1, 2, 2), (1, 1, 2, 2), "VALID")

    assert jnp.allclose(before_pool, ref_bp, atol=1e-3, rtol=1e-3)
    assert jnp.allclose(pooled, ref_pool, atol=1e-3, rtol=1e-3)
    print("KERNEL_OK")
</pallas_src>

<mosaic_0001>
module attributes {stable_mosaic.version = 11 : i64} {
  func.func @_downconv_kernel(%arg0: i32, %arg1: memref<1x16x64xf32, #tpu.memory_space<vmem>>, %arg2: memref<3x64x128xf32, #tpu.memory_space<vmem>>, %arg3: memref<1x128xf32, #tpu.memory_space<vmem>>, %arg4: memref<3x128x128xf32, #tpu.memory_space<vmem>>, %arg5: memref<1x128xf32, #tpu.memory_space<vmem>>, %arg6: memref<16x16xf32, #tpu.memory_space<vmem>>, %arg7: memref<16x16xf32, #tpu.memory_space<vmem>>, %arg8: memref<8x16xf32, #tpu.memory_space<vmem>>, %arg9: memref<8x16xf32, #tpu.memory_space<vmem>>, %arg10: memref<128x64xf32, #tpu.memory_space<vmem>>, %arg11: memref<128x64xf32, #tpu.memory_space<vmem>>, %arg12: memref<1x16x128xf32, #tpu.memory_space<vmem>>, %arg13: memref<1x8x64xf32, #tpu.memory_space<vmem>>) attributes {dimension_semantics = [#tpu.dimension_semantics<parallel>], iteration_bounds = array<i64: 2>, scalar_prefetch = 0 : i64, scratch_operands = 0 : i64, tpu.core_type = #tpu.core_type<tc>, window_params = [{transform_indices = @transform_0, window_bounds = array<i64: 1, 16, 64>}, {pipeline_mode = #tpu.pipeline_mode<synchronous>, transform_indices = @transform_1, window_bounds = array<i64: 3, 64, 128>}, {pipeline_mode = #tpu.pipeline_mode<synchronous>, transform_indices = @transform_2, window_bounds = array<i64: 1, 128>}, {pipeline_mode = #tpu.pipeline_mode<synchronous>, transform_indices = @transform_3, window_bounds = array<i64: 3, 128, 128>}, {pipeline_mode = #tpu.pipeline_mode<synchronous>, transform_indices = @transform_4, window_bounds = array<i64: 1, 128>}, {pipeline_mode = #tpu.pipeline_mode<synchronous>, transform_indices = @transform_5, window_bounds = array<i64: 16, 16>}, {pipeline_mode = #tpu.pipeline_mode<synchronous>, transform_indices = @transform_6, window_bounds = array<i64: 16, 16>}, {pipeline_mode = #tpu.pipeline_mode<synchronous>, transform_indices = @transform_7, window_bounds = array<i64: 8, 16>}, {pipeline_mode = #tpu.pipeline_mode<synchronous>, transform_indices = @transform_8, window_bounds = array<i64: 8, 16>}, {pipeline_mode = #tpu.pipeline_mode<synchronous>, transform_indices = @transform_9, window_bounds = array<i64: 128, 64>}, {pipeline_mode = #tpu.pipeline_mode<synchronous>, transform_indices = @transform_10, window_bounds = array<i64: 128, 64>}, {transform_indices = @transform_11, window_bounds = array<i64: 1, 16, 128>}, {transform_indices = @transform_12, window_bounds = array<i64: 1, 8, 64>}]} {
    %c0 = arith.constant 0 : index
    %c0_0 = arith.constant 0 : index
    %c0_1 = arith.constant 0 : index
    %0 = vector.load %arg1[%c0, %c0_0, %c0_1] : memref<1x16x64xf32, #tpu.memory_space<vmem>>, vector<1x16x64xf32>
    %1 = vector.shape_cast %0 : vector<1x16x64xf32> to vector<16x64xf32>
    %c0_2 = arith.constant 0 : index
    %c0_3 = arith.constant 0 : index
    %2 = vector.load %arg6[%c0_2, %c0_3] : memref<16x16xf32, #tpu.memory_space<vmem>>, vector<16x16xf32>
    %c0_4 = arith.constant 0 : index
    %c0_5 = arith.constant 0 : index
    %3 = vector.load %arg7[%c0_4, %c0_5] : memref<16x16xf32, #tpu.memory_space<vmem>>, vector<16x16xf32>
    %c0_6 = arith.constant 0 : index
    %c0_7 = arith.constant 0 : index
    %c0_8 = arith.constant 0 : index
    %4 = vector.load %arg2[%c0_6, %c0_7, %c0_8] : memref<3x64x128xf32, #tpu.memory_space<vmem>>, vector<1x64x128xf32>
    %5 = vector.shape_cast %4 : vector<1x64x128xf32> to vector<64x128xf32>
    %cst = arith.constant dense<0.000000e+00> : vector<16x128xf32>
    %6 = tpu.matmul %1, %5, %cst {dimension_numbers = #tpu.dot_dimension_numbers<[1], [0], [0], [1], [0, 0, 1, 1], [], []>} : vector<16x64xf32>, vector<64x128xf32>, vector<16x128xf32> -> vector<16x128xf32>
    %c1 = arith.constant 1 : index
    %c0_9 = arith.constant 0 : index
    %c0_10 = arith.constant 0 : index
    %7 = vector.load %arg2[%c1, %c0_9, %c0_10] : memref<3x64x128xf32, #tpu.memory_space<vmem>>, vector<1x64x128xf32>
    %8 = vector.shape_cast %7 : vector<1x64x128xf32> to vector<64x128xf32>
    %cst_11 = arith.constant dense<0.000000e+00> : vector<16x128xf32>
    %9 = tpu.matmul %1, %8, %cst_11 {dimension_numbers = #tpu.dot_dimension_numbers<[1], [0], [0], [1], [0, 0, 1, 1], [], []>} : vector<16x64xf32>, vector<64x128xf32>, vector<16x128xf32> -> vector<16x128xf32>
    %c2 = arith.constant 2 : index
    %c0_12 = arith.constant 0 : index
    %c0_13 = arith.constant 0 : index
    %10 = vector.load %arg2[%c2, %c0_12, %c0_13] : memref<3x64x128xf32, #tpu.memory_space<vmem>>, vector<1x64x128xf32>
    %11 = vector.shape_cast %10 : vector<1x64x128xf32> to vector<64x128xf32>
    %cst_14 = arith.constant dense<0.000000e+00> : vector<16x128xf32>
    %12 = tpu.matmul %1, %11, %cst_14 {dimension_numbers = #tpu.dot_dimension_numbers<[1], [0], [0], [1], [0, 0, 1, 1], [], []>} : vector<16x64xf32>, vector<64x128xf32>, vector<16x128xf32> -> vector<16x128xf32>
    %cst_15 = arith.constant dense<0.000000e+00> : vector<16x128xf32>
    %13 = tpu.matmul %2, %6, %cst_15 {dimension_numbers = #tpu.dot_dimension_numbers<[1], [0], [0], [1], [0, 0, 1, 1], [], []>} : vector<16x16xf32>, vector<16x128xf32>, vector<16x128xf32> -> vector<16x128xf32>
    %14 = arith.addf %13, %9 : vector<16x128xf32>
    %cst_16 = arith.constant dense<0.000000e+00> : vector<16x128xf32>
    %15 = tpu.matmul %3, %12, %cst_16 {dimension_numbers = #tpu.dot_dimension_numbers<[1], [0], [0], [1], [0, 0, 1, 1], [], []>} : vector<16x16xf32>, vector<16x128xf32>, vector<16x128xf32> -> vector<16x128xf32>
    %16 = arith.addf %14, %15 : vector<16x128xf32>
    %c0_17 = arith.constant 0 : index
    %c0_18 = arith.constant 0 : index
    %17 = vector.load %arg3[%c0_17, %c0_18] : memref<1x128xf32, #tpu.memory_space<vmem>>, vector<1x128xf32>
    %18 = vector.broadcast %17 : vector<1x128xf32> to vector<16x128xf32>
    %19 = arith.addf %16, %18 : vector<16x128xf32>
    %cst_19 = arith.constant 0.000000e+00 : f32
    %20 = vector.broadcast %cst_19 : f32 to vector<16x128xf32>
    %21 = arith.maximumf %19, %20 : vector<16x128xf32>
    %c0_20 = arith.constant 0 : index
    %c0_21 = arith.constant 0 : index
    %c0_22 = arith.constant 0 : index
    %22 = vector.load %arg4[%c0_20, %c0_21, %c0_22] : memref<3x128x128xf32, #tpu.memory_space<vmem>>, vector<1x128x128xf32>
    %23 = vector.shape_cast %22 : vector<1x128x128xf32> to vector<128x128xf32>
    %cst_23 = arith.constant dense<0.000000e+00> : vector<16x128xf32>
    %24 = tpu.matmul %21, %23, %cst_23 {dimension_numbers = #tpu.dot_dimension_numbers<[1], [0], [0], [1], [0, 0, 1, 1], [], []>} : vector<16x128xf32>, vector<128x128xf32>, vector<16x128xf32> -> vector<16x128xf32>
    %c1_24 = arith.constant 1 : index
    %c0_25 = arith.constant 0 : index
    %c0_26 = arith.constant 0 : index
    %25 = vector.load %arg4[%c1_24, %c0_25, %c0_26] : memref<3x128x128xf32, #tpu.memory_space<vmem>>, vector<1x128x128xf32>
    %26 = vector.shape_cast %25 : vector<1x128x128xf32> to vector<128x128xf32>
    %cst_27 = arith.constant dense<0.000000e+00> : vector<16x128xf32>
    %27 = tpu.matmul %21, %26, %cst_27 {dimension_numbers = #tpu.dot_dimension_numbers<[1], [0], [0], [1], [0, 0, 1, 1], [], []>} : vector<16x128xf32>, vector<128x128xf32>, vector<16x128xf32> -> vector<16x128xf32>
    %c2_28 = arith.constant 2 : index
    %c0_29 = arith.constant 0 : index
    %c0_30 = arith.constant 0 : index
    %28 = vector.load %arg4[%c2_28, %c0_29, %c0_30] : memref<3x128x128xf32, #tpu.memory_space<vmem>>, vector<1x128x128xf32>
    %29 = vector.shape_cast %28 : vector<1x128x128xf32> to vector<128x128xf32>
    %cst_31 = arith.constant dense<0.000000e+00> : vector<16x128xf32>
    %30 = tpu.matmul %21, %29, %cst_31 {dimension_numbers = #tpu.dot_dimension_numbers<[1], [0], [0], [1], [0, 0, 1, 1], [], []>} : vector<16x128xf32>, vector<128x128xf32>, vector<16x128xf32> -> vector<16x128xf32>
    %cst_32 = arith.constant dense<0.000000e+00> : vector<16x128xf32>
    %31 = tpu.matmul %2, %24, %cst_32 {dimension_numbers = #tpu.dot_dimension_numbers<[1], [0], [0], [1], [0, 0, 1, 1], [], []>} : vector<16x16xf32>, vector<16x128xf32>, vector<16x128xf32> -> vector<16x128xf32>
    %32 = arith.addf %31, %27 : vector<16x128xf32>
    %cst_33 = arith.constant dense<0.000000e+00> : vector<16x128xf32>
    %33 = tpu.matmul %3, %30, %cst_33 {dimension_numbers = #tpu.dot_dimension_numbers<[1], [0], [0], [1], [0, 0, 1, 1], [], []>} : vector<16x16xf32>, vector<16x128xf32>, vector<16x128xf32> -> vector<16x128xf32>
    %34 = arith.addf %32, %33 : vector<16x128xf32>
    %c0_34 = arith.constant 0 : index
    %c0_35 = arith.constant 0 : index
    %35 = vector.load %arg5[%c0_34, %c0_35] : memref<1x128xf32, #tpu.memory_space<vmem>>, vector<1x128xf32>
    %36 = vector.broadcast %35 : vector<1x128xf32> to vector<16x128xf32>
    %37 = arith.addf %34, %36 : vector<16x128xf32>
    %cst_36 = arith.constant 0.000000e+00 : f32
    %38 = vector.broadcast %cst_36 : f32 to vector<16x128xf32>
    %39 = arith.maximumf %37, %38 : vector<16x128xf32>
    %c0_37 = arith.constant 0 : index
    %c0_38 = arith.constant 0 : index
    %c0_39 = arith.constant 0 : index
    %40 = vector.load %arg12[%c0_37, %c0_38, %c0_39] : memref<1x16x128xf32, #tpu.memory_space<vmem>>, vector<1x16x128xf32>
    %41 = vector.shape_cast %40 : vector<1x16x128xf32> to vector<16x128xf32>
    %42 = vector.shape_cast %39 : vector<16x128xf32> to vector<1x16x128xf32>
    tpu.vector_store %arg12[%c0_37, %c0_38, %c0_39], %42 {strides = array<i32>} : memref<1x16x128xf32, #tpu.memory_space<vmem>>, vector<1x16x128xf32>,
    %c0_40 = arith.constant 0 : index
    %c0_41 = arith.constant 0 : index
    %43 = vector.load %arg8[%c0_40, %c0_41] : memref<8x16xf32, #tpu.memory_space<vmem>>, vector<8x16xf32>
    %cst_42 = arith.constant dense<0.000000e+00> : vector<8x128xf32>
    %44 = tpu.matmul %43, %39, %cst_42 {dimension_numbers = #tpu.dot_dimension_numbers<[1], [0], [0], [1], [0, 0, 1, 1], [], []>} : vector<8x16xf32>, vector<16x128xf32>, vector<8x128xf32> -> vector<8x128xf32>
    %c0_43 = arith.constant 0 : index
    %c0_44 = arith.constant 0 : index
    %45 = vector.load %arg9[%c0_43, %c0_44] : memref<8x16xf32, #tpu.memory_space<vmem>>, vector<8x16xf32>
    %cst_45 = arith.constant dense<0.000000e+00> : vector<8x128xf32>
    %46 = tpu.matmul %45, %39, %cst_45 {dimension_numbers = #tpu.dot_dimension_numbers<[1], [0], [0], [1], [0, 0, 1, 1], [], []>} : vector<8x16xf32>, vector<16x128xf32>, vector<8x128xf32> -> vector<8x128xf32>
    %47 = arith.maximumf %44, %46 : vector<8x128xf32>
    %c0_46 = arith.constant 0 : index
    %c0_47 = arith.constant 0 : index
    %48 = vector.load %arg10[%c0_46, %c0_47] : memref<128x64xf32, #tpu.memory_space<vmem>>, vector<128x64xf32>
    %cst_48 = arith.constant dense<0.000000e+00> : vector<8x64xf32>
    %49 = tpu.matmul %47, %48, %cst_48 {dimension_numbers = #tpu.dot_dimension_numbers<[1], [0], [0], [1], [0, 0, 1, 1], [], []>} : vector<8x128xf32>, vector<128x64xf32>, vector<8x64xf32> -> vector<8x64xf32>
    %c0_49 = arith.constant 0 : index
    %c0_50 = arith.constant 0 : index
    %50 = vector.load %arg11[%c0_49, %c0_50] : memref<128x64xf32, #tpu.memory_space<vmem>>, vector<128x64xf32>
    %cst_51 = arith.constant dense<0.000000e+00> : vector<8x64xf32>
    %51 = tpu.matmul %47, %50, %cst_51 {dimension_numbers = #tpu.dot_dimension_numbers<[1], [0], [0], [1], [0, 0, 1, 1], [], []>} : vector<8x128xf32>, vector<128x64xf32>, vector<8x64xf32> -> vector<8x64xf32>
    %52 = arith.maximumf %49, %51 : vector<8x64xf32>
    %c0_52 = arith.constant 0 : index
    %c0_53 = arith.constant 0 : index
    %c0_54 = arith.constant 0 : index
    %53 = vector.load %arg13[%c0_52, %c0_53, %c0_54] : memref<1x8x64xf32, #tpu.memory_space<vmem>>, vector<1x8x64xf32>
    %54 = vector.shape_cast %53 : vector<1x8x64xf32> to vector<8x64xf32>
    %55 = vector.shape_cast %52 : vector<8x64xf32> to vector<1x8x64xf32>
    tpu.vector_store %arg13[%c0_52, %c0_53, %c0_54], %55 {strides = array<i32>} : memref<1x8x64xf32, #tpu.memory_space<vmem>>, vector<1x8x64xf32>,
    return
  }
  func.func @transform_0(%arg0: i32) -> (i32, i32, i32) {
    %c0_i32 = arith.constant 0 : i32
    %c0_i32_0 = arith.constant 0 : i32
    %c0_i32_1 = arith.constant 0 : i32
    return %arg0, %c0_i32, %c0_i32_0 : i32, i32, i32
  }
  func.func @transform_1(%arg0: i32) -> (i32, i32, i32) {
    %c0_i32 = arith.constant 0 : i32
    %c0_i32_0 = arith.constant 0 : i32
    %c0_i32_1 = arith.constant 0 : i32
    %c0_i32_2 = arith.constant 0 : i32
    return %c0_i32, %c0_i32_0, %c0_i32_1 : i32, i32, i32
  }
  func.func @transform_2(%arg0: i32) -> (i32, i32) {
    %c0_i32 = arith.constant 0 : i32
    %c0_i32_0 = arith.constant 0 : i32
    %c0_i32_1 = arith.constant 0 : i32
    return %c0_i32, %c0_i32_0 : i32, i32
  }
  func.func @transform_3(%arg0: i32) -> (i32, i32, i32) {
    %c0_i32 = arith.constant 0 : i32
    %c0_i32_0 = arith.constant 0 : i32
    %c0_i32_1 = arith.constant 0 : i32
    %c0_i32_2 = arith.constant 0 : i32
    return %c0_i32, %c0_i32_0, %c0_i32_1 : i32, i32, i32
  }
  func.func @transform_4(%arg0: i32) -> (i32, i32) {
    %c0_i32 = arith.constant 0 : i32
    %c0_i32_0 = arith.constant 0 : i32
    %c0_i32_1 = arith.constant 0 : i32
    return %c0_i32, %c0_i32_0 : i32, i32
  }
  func.func @transform_5(%arg0: i32) -> (i32, i32) {
    %c0_i32 = arith.constant 0 : i32
    %c0_i32_0 = arith.constant 0 : i32
    %c0_i32_1 = arith.constant 0 : i32
    return %c0_i32, %c0_i32_0 : i32, i32
  }
  func.func @transform_6(%arg0: i32) -> (i32, i32) {
    %c0_i32 = arith.constant 0 : i32
    %c0_i32_0 = arith.constant 0 : i32
    %c0_i32_1 = arith.constant 0 : i32
    return %c0_i32, %c0_i32_0 : i32, i32
  }
  func.func @transform_7(%arg0: i32) -> (i32, i32) {
    %c0_i32 = arith.constant 0 : i32
    %c0_i32_0 = arith.constant 0 : i32
    %c0_i32_1 = arith.constant 0 : i32
    return %c0_i32, %c0_i32_0 : i32, i32
  }
  func.func @transform_8(%arg0: i32) -> (i32, i32) {
    %c0_i32 = arith.constant 0 : i32
    %c0_i32_0 = arith.constant 0 : i32
    %c0_i32_1 = arith.constant 0 : i32
    return %c0_i32, %c0_i32_0 : i32, i32
  }
  func.func @transform_9(%arg0: i32) -> (i32, i32) {
    %c0_i32 = arith.constant 0 : i32
    %c0_i32_0 = arith.constant 0 : i32
    %c0_i32_1 = arith.constant 0 : i32
    return %c0_i32, %c0_i32_0 : i32, i32
  }
  func.func @transform_10(%arg0: i32) -> (i32, i32) {
    %c0_i32 = arith.constant 0 : i32
    %c0_i32_0 = arith.constant 0 : i32
    %c0_i32_1 = arith.constant 0 : i32
    return %c0_i32, %c0_i32_0 : i32, i32
  }
  func.func @transform_11(%arg0: i32) -> (i32, i32, i32) {
    %c0_i32 = arith.constant 0 : i32
    %c0_i32_0 = arith.constant 0 : i32
    %c0_i32_1 = arith.constant 0 : i32
    return %arg0, %c0_i32, %c0_i32_0 : i32, i32, i32
  }
  func.func @transform_12(%arg0: i32) -> (i32, i32, i32) {
    %c0_i32 = arith.constant 0 : i32
    %c0_i32_0 = arith.constant 0 : i32
    %c0_i32_1 = arith.constant 0 : i32
    return %arg0, %c0_i32, %c0_i32_0 : i32, i32, i32
  }
}

</mosaic_0001>

<llo_original>
// kernel: tile.13
$region0: #{tile.13}
  #allocation0 [shape = 's32[1]{0}', space=sflag, size = 0x4, scoped, tag = 'scoped memory for tile.13']
  %s0 = inlined_call_operand.vmem [shape: f32[8], index: 0, kind: input, shape index: {}]
  %s1 = inlined_call_operand.vmem [shape: f32[16,8], index: 1, kind: output, shape index: {}]
  // Predicated region
  $region2: #{tile.13} parent=0 // pred_check
    _
  $region3: #{tile.13} parent=0 // pred_check_branch
    %3 = sbr.rel (0) target = $region5
  $region4: #{tile.13} parent=0 // pred_region
    _
  $region5: #{tile.13} parent=0 // pred_fallthru
    _
  %v4 = vld [vmem:[%s0] ss:$0 sm:$0xff]
  %5 = vst [vmem:[%s1] sm:$0xff] %v4
  %s6 = scalar_lea.vmem %s1, 8
  %7 = vst [vmem:[%s6] sm:$0xff] %v4

// kernel: tile.14
$region0: #{tile.14}
  %s0 = inlined_call_operand.vmem [shape: f32[16,8], index: 0, kind: input, shape index: {}]
  %s1 = inlined_call_operand.vmem [shape: f32[1,128], index: 1, kind: output, shape index: {}]
  $region1: #{tile.14} parent=0
    #allocation0 [shape = 'u8[4096]{0}', space=vmem, size = 0x1000, scoped, tag = 'scoped mem for output reshape']
    %v2 = vld [vmem:[%s0] sm:$0x1]
    %vm3 = vcmask 64512
    %4 = vst.msk [vmem:[#allocation0] sm:$0x1] %vm3, %v2
    %s5 = scalar_lea.vmem %s0, 15
    %v6 = vld [vmem:[%s5] sm:$0x1]
    %7 = vrot.lane.b32.xlu0 %v6, 120
    %v8 = vpop.permute.xlu0 %7
    %vm9 = vcmask 1048512
    %10 = vst.msk [vmem:[#allocation0] sm:$0x1] %vm9, %v8
    %s11 = scalar_lea.vmem %s0, 14
    %v12 = vld [vmem:[%s11] sm:$0x1]
    %13 = vrot.lane.b32.xlu0 %v12, 112
    %v14 = vpop.permute.xlu0 %13
    %vm15 = vcmask 982912
    %16 = vst.msk [vmem:[#allocation0] sm:$0x1] %vm15, %v14
    %s17 = scalar_lea.vmem %s0, 13
    %v18 = vld [vmem:[%s17] sm:$0x1]
    %19 = vrot.lane.b32.xlu0 %v18, 104
    %v20 = vpop.permute.xlu0 %19
    %vm21 = vcmask 917312
    %22 = vst.msk [vmem:[#allocation0] sm:$0x1] %vm21, %v20
    %s23 = scalar_lea.vmem %s0, 12
    %v24 = vld [vmem:[%s23] sm:$0x1]
    %25 = vrot.lane.b32.xlu0 %v24, 96
    %v26 = vpop.permute.xlu0 %25
    %vm27 = vcmask 851712
    %28 = vst.msk [vmem:[#allocation0] sm:$0x1] %vm27, %v26
    %s29 = scalar_lea.vmem %s0, 11
    %v30 = vld [vmem:[%s29] sm:$0x1]
    %31 = vrot.lane.b32.xlu0 %v30, 88
    %v32 = vpop.permute.xlu0 %31
    %vm33 = vcmask 786112
    %34 = vst.msk [vmem:[#allocation0] sm:$0x1] %vm33, %v32
    %s35 = scalar_lea.vmem %s0, 10
    %v36 = vld [vmem:[%s35] sm:$0x1]
    %37 = vrot.lane.b32.xlu0 %v36, 80
    %v38 = vpop.permute.xlu0 %37
    %vm39 = vcmask 720512
    %40 = vst.msk [vmem:[#allocation0] sm:$0x1] %vm39, %v38
    %s41 = scalar_lea.vmem %s0, 9
    %v42 = vld [vmem:[%s41] sm:$0x1]
    %43 = vrot.lane.b32.xlu0 %v42, 72
    %v44 = vpop.permute.xlu0 %43
    %vm45 = vcmask 654912
    %46 = vst.msk [vmem:[#allocation0] sm:$0x1] %vm45, %v44
    %s47 = scalar_lea.vmem %s0, 8
    %v48 = vld [vmem:[%s47] sm:$0x1]
    %49 = vrot.lane.b32.xlu0 %v48, 64
    %v50 = vpop.permute.xlu0 %49
    %vm51 = vcmask 589312
    %52 = vst.msk [vmem:[#allocation0] sm:$0x1] %vm51, %v50
    %s53 = scalar_lea.vmem %s0, 7
    %v54 = vld [vmem:[%s53] sm:$0x1]
    %55 = vrot.lane.b32.xlu0 %v54, 56
    %v56 = vpop.permute.xlu0 %55
    %vm57 = vcmask 523712
    %58 = vst.msk [vmem:[#allocation0] sm:$0x1] %vm57, %v56
    %s59 = scalar_lea.vmem %s0, 6
    %v60 = vld [vmem:[%s59] sm:$0x1]
    %61 = vrot.lane.b32.xlu0 %v60, 48
    %v62 = vpop.permute.xlu0 %61
    %vm63 = vcmask 458112
    %64 = vst.msk [vmem:[#allocation0] sm:$0x1] %vm63, %v62
    %s65 = scalar_lea.vmem %s0, 5
    %v66 = vld [vmem:[%s65] sm:$0x1]
    %67 = vrot.lane.b32.xlu0 %v66, 40
    %v68 = vpop.permute.xlu0 %67
    %vm69 = vcmask 392512
    %70 = vst.msk [vmem:[#allocation0] sm:$0x1] %vm69, %v68
    %s71 = scalar_lea.vmem %s0, 4
    %v72 = vld [vmem:[%s71] sm:$0x1]
    %73 = vrot.lane.b32.xlu0 %v72, 32
    %v74 = vpop.permute.xlu0 %73
    %vm75 = vcmask 326912
    %76 = vst.msk [vmem:[#allocation0] sm:$0x1] %vm75, %v74
    %s77 = scalar_lea.vmem %s0, 3
    %v78 = vld [vmem:[%s77] sm:$0x1]
    %79 = vrot.lane.b32.xlu0 %v78, 24
    %v80 = vpop.permute.xlu0 %79
    %vm81 = vcmask 261312
    %82 = vst.msk [vmem:[#allocation0] sm:$0x1] %vm81, %v80
    %s83 = scalar_lea.vmem %s0, 2
    %v84 = vld [vmem:[%s83] sm:$0x1]
    %85 = vrot.lane.b32.xlu0 %v84, 16
    %v86 = vpop.permute.xlu0 %85
    %vm87 = vcmask 195712
    %88 = vst.msk [vmem:[#allocation0] sm:$0x1] %vm87, %v86
    %s89 = scalar_lea.vmem %s0, 1
    %v90 = vld [vmem:[%s89] sm:$0x1]
    %91 = vrot.lane.b32.xlu0 %v90, 8
    %v92 = vpop.permute.xlu0 %91
    %vm93 = vcmask 130112
    %94 = vst.msk [vmem:[#allocation0] sm:$0x1] %vm93, %v92
    %s96 = sshllo.u32 0, 1
    %v98 = vld [vmem:[#allocation0] sm:%s96]
    %s99 = sshllo.u32 0, 1
    %100 = vst [vmem:[%s1] sm:%s99] %v98

// kernel: down_conv.1
$region0: #{down_conv.1}
  #allocation0 [shape = 'u32[]', space=smem, size = 0x4, offset = 0x4, fixed_abs, tag = 'smem constant byte address 0x4 - core index']
  #allocation1 [shape = 'u32[144,128]{1,0:T(1,128)}', space=vmem, size = 0x12000, scoped, tag = 'internal scratch']
  %s0 = inlined_call_operand.vmem [shape: f32[2,16,64], index: 0, kind: input, shape index: {}]
  %s1 = inlined_call_operand.vmem [shape: f32[3,64,128], index: 1, kind: input, shape index: {}]
  %s2 = inlined_call_operand.vmem [shape: f32[1,128], index: 2, kind: input, shape index: {}]
  %s3 = inlined_call_operand.vmem [shape: f32[3,128,128], index: 3, kind: input, shape index: {}]
  %s4 = inlined_call_operand.vmem [shape: f32[1,128], index: 4, kind: input, shape index: {}]
  %s5 = inlined_call_operand.vmem [shape: f32[16,16], index: 5, kind: input, shape index: {}]
  %s6 = inlined_call_operand.vmem [shape: f32[16,16], index: 6, kind: input, shape index: {}]
  %s7 = inlined_call_operand.vmem [shape: f32[8,16], index: 7, kind: input, shape index: {}]
  %s8 = inlined_call_operand.vmem [shape: f32[8,16], index: 8, kind: input, shape index: {}]
  %s9 = inlined_call_operand.vmem [shape: f32[128,64], index: 9, kind: input, shape index: {}]
  %s10 = inlined_call_operand.vmem [shape: f32[128,64], index: 10, kind: input, shape index: {}]
  %s11 = inlined_call_operand.vmem [shape: f32[2,16,128], index: 11, kind: output, shape index: {0}]
  %s12 = inlined_call_operand.vmem [shape: f32[2,8,64], index: 12, kind: output, shape index: {1}]
  %13 = xla_tuple %s11, %s12
  %s14 = sld [smem:[#allocation0]]
  $region85: #{down_conv.1} parent=0
    _
  %s16 = ssub.s32 1, %s14
  %s17 = scalar_select 0, %s16, %s14
  loop: start=0, step=1, limit=4
  $region2: #{down_conv.1} parent=0 // loop_pre_header
    _
  $region3: #{down_conv.1} parent=0 // loop_header
    %s19 = sphi 0, %s23
    %p20 = scmp.ge.s32.totalorder %s19, 4
    %s29 = sphi 0, %s31
    %s32 = sphi 0, %s29
    %s33 = sphi 0, %s32
    %s49 = sphi 0, %s33
    %s53 = sphi 0, %s53
    %s55 = sphi 0, %s53
    %s56 = sphi 0, %s55
    %s70 = sphi 0, %s56
    %s74 = sphi 0, %s74
    %s76 = sphi 0, %s74
    %s77 = sphi 0, %s76
    %s91 = sphi 0, %s77
    %s95 = sphi 0, %s95
    %s97 = sphi 0, %s95
    %s98 = sphi 0, %s97
    %s112 = sphi 0, %s98
    %s116 = sphi 0, %s116
    %s118 = sphi 0, %s116
    %s119 = sphi 0, %s118
    %s133 = sphi 0, %s119
    %s137 = sphi 0, %s137
    %s139 = sphi 0, %s137
    %s140 = sphi 0, %s139
    %s154 = sphi 0, %s140
    %s158 = sphi 0, %s158
    %s160 = sphi 0, %s158
    %s161 = sphi 0, %s160
    %s175 = sphi 0, %s161
    %s179 = sphi 0, %s179
    %s181 = sphi 0, %s179
    %s182 = sphi 0, %s181
    %s196 = sphi 0, %s182
    %s200 = sphi 0, %s200
    %s202 = sphi 0, %s200
    %s203 = sphi 0, %s202
    %s217 = sphi 0, %s203
    %s221 = sphi 0, %s221
    %s223 = sphi 0, %s221
    %s224 = sphi 0, %s223
    %s238 = sphi 0, %s224
    %s242 = sphi 0, %s242
    %s244 = sphi 0, %s242
    %s245 = sphi 0, %s244
    %s259 = sphi 0, %s245
    %s265 = sphi 0, %s267
    %s268 = sphi 0, %s265
    %s269 = sphi 0, %s268
    %s285 = sphi 0, %s269
    %s291 = sphi 0, %s293
    %s294 = sphi 0, %s291
    %s295 = sphi 0, %s294
    %s311 = sphi 0, %s295
  $region4: #{down_conv.1} parent=0 // loop_header_branch
    %22 = sbr.rel (%p20) target = $region8
  $region5: #{down_conv.1} parent=0 // loop_body
    %s24 = ssub.s32 %s19, 1
    %s25 = ssub.s32 %s19, 2
    %s26 = sadd.s32 %s19, 1
    %s27 = ssub.s32 %s19, %s26
    %p28 = scmp.eq.s32.totalorder %s27, 0
    %s30 = sadd.s32 %s29, 1
    %s31 = scalar_select %p28, %s29, %s30
    %p34 = pneg %p28
    %p35 = scmp.eq.s32.totalorder %s19, 1
    %p36 = por %p34, %p35
    %p37 = scmp.ne.s32.totalorder %s29, %s32
    %p38 = scmp.eq.s32.totalorder %s19, 0
    %p39 = por %p37, %p38
    %p40 = scmp.ne.s32.totalorder %s29, %s32
    %p41 = scmp.eq.s32.totalorder %s24, 1
    %p42 = por %p40, %p41
    %p43 = scmp.ne.s32.totalorder %s32, %s33
    %p44 = scmp.eq.s32.totalorder %s24, 0
    %p45 = por %p43, %p44
    %p46 = scmp.ne.s32.totalorder %s32, %s33
    %p47 = scmp.eq.s32.totalorder %s25, 1
    %p48 = por %p46, %p47
    %p50 = scmp.ne.s32.totalorder %s33, %s49
    %p51 = scmp.eq.s32.totalorder %s25, 0
    %p52 = por %p50, %p51
    %s54 = sadd.s32 %s53, 1
    %p57 = scmp.eq.s32.totalorder %s19, 1
    %p58 = scmp.ne.s32.totalorder %s53, %s55
    %p59 = scmp.eq.s32.totalorder %s19, 0
    %p60 = por %p58, %p59
    %p61 = scmp.ne.s32.totalorder %s53, %s55
    %p62 = scmp.eq.s32.totalorder %s24, 1
    %p63 = por %p61, %p62
    %p64 = scmp.ne.s32.totalorder %s55, %s56
    %p65 = scmp.eq.s32.totalorder %s24, 0
    %p66 = por %p64, %p65
    %p67 = scmp.ne.s32.totalorder %s55, %s56
    %p68 = scmp.eq.s32.totalorder %s25, 1
    %p69 = por %p67, %p68
    %p71 = scmp.ne.s32.totalorder %s56, %s70
    %p72 = scmp.eq.s32.totalorder %s25, 0
    %p73 = por %p71, %p72
    %s75 = sadd.s32 %s74, 1
    %p78 = scmp.eq.s32.totalorder %s19, 1
    %p79 = scmp.ne.s32.totalorder %s74, %s76
    %p80 = scmp.eq.s32.totalorder %s19, 0
    %p81 = por %p79, %p80
    %p82 = scmp.ne.s32.totalorder %s74, %s76
    %p83 = scmp.eq.s32.totalorder %s24, 1
    %p84 = por %p82, %p83
    %p85 = scmp.ne.s32.totalorder %s76, %s77
    %p86 = scmp.eq.s32.totalorder %s24, 0
    %p87 = por %p85, %p86
    %p88 = scmp.ne.s32.totalorder %s76, %s77
    %p89 = scmp.eq.s32.totalorder %s25, 1
    %p90 = por %p88, %p89
    %p92 = scmp.ne.s32.totalorder %s77, %s91
    %p93 = scmp.eq.s32.totalorder %s25, 0
    %p94 = por %p92, %p93
    %s96 = sadd.s32 %s95, 1
    %p99 = scmp.eq.s32.totalorder %s19, 1
    %p100 = scmp.ne.s32.totalorder %s95, %s97
    %p101 = scmp.eq.s32.totalorder %s19, 0
    %p102 = por %p100, %p101
    %p103 = scmp.ne.s32.totalorder %s95, %s97
    %p104 = scmp.eq.s32.totalorder %s24, 1
    %p105 = por %p103, %p104
    %p106 = scmp.ne.s32.totalorder %s97, %s98
    %p107 = scmp.eq.s32.totalorder %s24, 0
    %p108 = por %p106, %p107
    %p109 = scmp.ne.s32.totalorder %s97, %s98
    %p110 = scmp.eq.s32.totalorder %s25, 1
    %p111 = por %p109, %p110
    %p113 = scmp.ne.s32.totalorder %s98, %s112
    %p114 = scmp.eq.s32.totalorder %s25, 0
    %p115 = por %p113, %p114
    %s117 = sadd.s32 %s116, 1
    %p120 = scmp.eq.s32.totalorder %s19, 1
    %p121 = scmp.ne.s32.totalorder %s116, %s118
    %p122 = scmp.eq.s32.totalorder %s19, 0
    %p123 = por %p121, %p122
    %p124 = scmp.ne.s32.totalorder %s116, %s118
    %p125 = scmp.eq.s32.totalorder %s24, 1
    %p126 = por %p124, %p125
    %p127 = scmp.ne.s32.totalorder %s118, %s119
    %p128 = scmp.eq.s32.totalorder %s24, 0
    %p129 = por %p127, %p128
    %p130 = scmp.ne.s32.totalorder %s118, %s119
    %p131 = scmp.eq.s32.totalorder %s25, 1
    %p132 = por %p130, %p131
    %p134 = scmp.ne.s32.totalorder %s119, %s133
    %p135 = scmp.eq.s32.totalorder %s25, 0
    %p136 = por %p134, %p135
    %s138 = sadd.s32 %s137, 1
    %p141 = scmp.eq.s32.totalorder %s19, 1
    %p142 = scmp.ne.s32.totalorder %s137, %s139
    %p143 = scmp.eq.s32.totalorder %s19, 0
    %p144 = por %p142, %p143
    %p145 = scmp.ne.s32.totalorder %s137, %s139
    %p146 = scmp.eq.s32.totalorder %s24, 1
    %p147 = por %p145, %p146
    %p148 = scmp.ne.s32.totalorder %s139, %s140
    %p149 = scmp.eq.s32.totalorder %s24, 0
    %p150 = por %p148, %p149
    %p151 = scmp.ne.s32.totalorder %s139, %s140
    %p152 = scmp.eq.s32.totalorder %s25, 1
    %p153 = por %p151, %p152
    %p155 = scmp.ne.s32.totalorder %s140, %s154
    %p156 = scmp.eq.s32.totalorder %s25, 0
    %p157 = por %p155, %p156
    %s159 = sadd.s32 %s158, 1
    %p162 = scmp.eq.s32.totalorder %s19, 1
    %p163 = scmp.ne.s32.totalorder %s158, %s160
    %p164 = scmp.eq.s32.totalorder %s19, 0
    %p165 = por %p163, %p164
    %p166 = scmp.ne.s32.totalorder %s158, %s160
    %p167 = scmp.eq.s32.totalorder %s24, 1
    %p168 = por %p166, %p167
    %p169 = scmp.ne.s32.totalorder %s160, %s161
    %p170 = scmp.eq.s32.totalorder %s24, 0
    %p171 = por %p169, %p170
    %p172 = scmp.ne.s32.totalorder %s160, %s161
    %p173 = scmp.eq.s32.totalorder %s25, 1
    %p174 = por %p172, %p173
    %p176 = scmp.ne.s32.totalorder %s161, %s175
    %p177 = scmp.eq.s32.totalorder %s25, 0
    %p178 = por %p176, %p177
    %s180 = sadd.s32 %s179, 1
    %p183 = scmp.eq.s32.totalorder %s19, 1
    %p184 = scmp.ne.s32.totalorder %s179, %s181
    %p185 = scmp.eq.s32.totalorder %s19, 0
    %p186 = por %p184, %p185
    %p187 = scmp.ne.s32.totalorder %s179, %s181
    %p188 = scmp.eq.s32.totalorder %s24, 1
    %p189 = por %p187, %p188
    %p190 = scmp.ne.s32.totalorder %s181, %s182
    %p191 = scmp.eq.s32.totalorder %s24, 0
    %p192 = por %p190, %p191
    %p193 = scmp.ne.s32.totalorder %s181, %s182
    %p194 = scmp.eq.s32.totalorder %s25, 1
    %p195 = por %p193, %p194
    %p197 = scmp.ne.s32.totalorder %s182, %s196
    %p198 = scmp.eq.s32.totalorder %s25, 0
    %p199 = por %p197, %p198
    %s201 = sadd.s32 %s200, 1
    %p204 = scmp.eq.s32.totalorder %s19, 1
    %p205 = scmp.ne.s32.totalorder %s200, %s202
    %p206 = scmp.eq.s32.totalorder %s19, 0
    %p207 = por %p205, %p206
    %p208 = scmp.ne.s32.totalorder %s200, %s202
    %p209 = scmp.eq.s32.totalorder %s24, 1
    %p210 = por %p208, %p209
    %p211 = scmp.ne.s32.totalorder %s202, %s203
    %p212 = scmp.eq.s32.totalorder %s24, 0
    %p213 = por %p211, %p212
    %p214 = scmp.ne.s32.totalorder %s202, %s203
    %p215 = scmp.eq.s32.totalorder %s25, 1
    %p216 = por %p214, %p215
    %p218 = scmp.ne.s32.totalorder %s203, %s217
    %p219 = scmp.eq.s32.totalorder %s25, 0
    %p220 = por %p218, %p219
    %s222 = sadd.s32 %s221, 1
    %p225 = scmp.eq.s32.totalorder %s19, 1
    %p226 = scmp.ne.s32.totalorder %s221, %s223
    %p227 = scmp.eq.s32.totalorder %s19, 0
    %p228 = por %p226, %p227
    %p229 = scmp.ne.s32.totalorder %s221, %s223
    %p230 = scmp.eq.s32.totalorder %s24, 1
    %p231 = por %p229, %p230
    %p232 = scmp.ne.s32.totalorder %s223, %s224
    %p233 = scmp.eq.s32.totalorder %s24, 0
    %p234 = por %p232, %p233
    %p235 = scmp.ne.s32.totalorder %s223, %s224
    %p236 = scmp.eq.s32.totalorder %s25, 1
    %p237 = por %p235, %p236
    %p239 = scmp.ne.s32.totalorder %s224, %s238
    %p240 = scmp.eq.s32.totalorder %s25, 0
    %p241 = por %p239, %p240
    %s243 = sadd.s32 %s242, 1
    %p246 = scmp.eq.s32.totalorder %s19, 1
    %p247 = scmp.ne.s32.totalorder %s242, %s244
    %p248 = scmp.eq.s32.totalorder %s19, 0
    %p249 = por %p247, %p248
    %p250 = scmp.ne.s32.totalorder %s242, %s244
    %p251 = scmp.eq.s32.totalorder %s24, 1
    %p252 = por %p250, %p251
    %p253 = scmp.ne.s32.totalorder %s244, %s245
    %p254 = scmp.eq.s32.totalorder %s24, 0
    %p255 = por %p253, %p254
    %p256 = scmp.ne.s32.totalorder %s244, %s245
    %p257 = scmp.eq.s32.totalorder %s25, 1
    %p258 = por %p256, %p257
    %p260 = scmp.ne.s32.totalorder %s245, %s259
    %p261 = scmp.eq.s32.totalorder %s25, 0
    %p262 = por %p260, %p261
    %s263 = ssub.s32 %s19, %s26
    %p264 = scmp.eq.s32.totalorder %s263, 0
    %s266 = sadd.s32 %s265, 1
    %s267 = scalar_select %p264, %s265, %s266
    %p270 = pneg %p264
    %p271 = scmp.eq.s32.totalorder %s19, 1
    %p272 = por %p270, %p271
    %p273 = scmp.ne.s32.totalorder %s265, %s268
    %p274 = scmp.eq.s32.totalorder %s19, 0
    %p275 = por %p273, %p274
    %p276 = scmp.ne.s32.totalorder %s265, %s268
    %p277 = scmp.eq.s32.totalorder %s24, 1
    %p278 = por %p276, %p277
    %p279 = scmp.ne.s32.totalorder %s268, %s269
    %p280 = scmp.eq.s32.totalorder %s24, 0
    %p281 = por %p279, %p280
    %p282 = scmp.ne.s32.totalorder %s268, %s269
    %p283 = scmp.eq.s32.totalorder %s25, 1
    %p284 = por %p282, %p283
    %p286 = scmp.ne.s32.totalorder %s269, %s285
    %p287 = scmp.eq.s32.totalorder %s25, 0
    %p288 = por %p286, %p287
    %s289 = ssub.s32 %s19, %s26
    %p290 = scmp.eq.s32.totalorder %s289, 0
    %s292 = sadd.s32 %s291, 1
    %s293 = scalar_select %p290, %s291, %s292
    %p296 = pneg %p290
    %p297 = scmp.eq.s32.totalorder %s19, 1
    %p298 = por %p296, %p297
    %p299 = scmp.ne.s32.totalorder %s291, %s294
    %p300 = scmp.eq.s32.totalorder %s19, 0
    %p301 = por %p299, %p300
    %p302 = scmp.ne.s32.totalorder %s291, %s294
    %p303 = scmp.eq.s32.totalorder %s24, 1
    %p304 = por %p302, %p303
    %p305 = scmp.ne.s32.totalorder %s294, %s295
    %p306 = scmp.eq.s32.totalorder %s24, 0
    %p307 = por %p305, %p306
    %p308 = scmp.ne.s32.totalorder %s294, %s295
    %p309 = scmp.eq.s32.totalorder %s25, 1
    %p310 = por %p308, %p309
    %p312 = scmp.ne.s32.totalorder %s295, %s311
    %p313 = scmp.eq.s32.totalorder %s25, 0
    %p314 = por %p312, %p313
    %p315 = scmp.le.s32.totalorder 1, %s19
    %p316 = scmp.lt.s32.totalorder %s19, 3
    %p317 = pnand %p315, %p316
    %p318 = pneg %p317
    // Predicated region
    $region9: #{down_conv.1} parent=5 // pred_check
      _
    $region10: #{down_conv.1} parent=5 // pred_check_branch
      %320 = sbr.rel (%p317) target = $region12
    $region11: #{down_conv.1} parent=5 // pred_region
      %s321 = ssub.s32 %s19, 1
      // Predicated region
      $region13: #{down_conv.1} parent=11 // pred_check
        %p322 = pneg %p66
      $region14: #{down_conv.1} parent=11 // pred_check_branch
        %324 = sbr.rel (%p322) target = $region16
      $region15: #{down_conv.1} parent=11 // pred_region
        _
      $region16: #{down_conv.1} parent=11 // pred_fallthru
        _
      // Predicated region
      $region17: #{down_conv.1} parent=11 // pred_check
        %p325 = pneg %p87
      $region18: #{down_conv.1} parent=11 // pred_check_branch
        %327 = sbr.rel (%p325) target = $region20
      $region19: #{down_conv.1} parent=11 // pred_region
        _
      $region20: #{down_conv.1} parent=11 // pred_fallthru
        _
      // Predicated region
      $region21: #{down_conv.1} parent=11 // pred_check
        %p328 = pneg %p108
      $region22: #{down_conv.1} parent=11 // pred_check_branch
        %330 = sbr.rel (%p328) target = $region24
      $region23: #{down_conv.1} parent=11 // pred_region
        _
      $region24: #{down_conv.1} parent=11 // pred_fallthru
        _
      // Predicated region
      $region25: #{down_conv.1} parent=11 // pred_check
        %p331 = pneg %p129
      $region26: #{down_conv.1} parent=11 // pred_check_branch
        %333 = sbr.rel (%p331) target = $region28
      $region27: #{down_conv.1} parent=11 // pred_region
        _
      $region28: #{down_conv.1} parent=11 // pred_fallthru
        _
      // Predicated region
      $region29: #{down_conv.1} parent=11 // pred_check
        %p334 = pneg %p150
      $region30: #{down_conv.1} parent=11 // pred_check_branch
        %336 = sbr.rel (%p334) target = $region32
      $region31: #{down_conv.1} parent=11 // pred_region
        _
      $region32: #{down_conv.1} parent=11 // pred_fallthru
        _
      // Predicated region
      $region33: #{down_conv.1} parent=11 // pred_check
        %p337 = pneg %p171
      $region34: #{down_conv.1} parent=11 // pred_check_branch
        %339 = sbr.rel (%p337) target = $region36
      $region35: #{down_conv.1} parent=11 // pred_region
        _
      $region36: #{down_conv.1} parent=11 // pred_fallthru
        _
      // Predicated region
      $region37: #{down_conv.1} parent=11 // pred_check
        %p340 = pneg %p192
      $region38: #{down_conv.1} parent=11 // pred_check_branch
        %342 = sbr.rel (%p340) target = $region40
      $region39: #{down_conv.1} parent=11 // pred_region
        _
      $region40: #{down_conv.1} parent=11 // pred_fallthru
        _
      // Predicated region
      $region41: #{down_conv.1} parent=11 // pred_check
        %p343 = pneg %p213
      $region42: #{down_conv.1} parent=11 // pred_check_branch
        %345 = sbr.rel (%p343) target = $region44
      $region43: #{down_conv.1} parent=11 // pred_region
        _
      $region44: #{down_conv.1} parent=11 // pred_fallthru
        _
      // Predicated region
      $region45: #{down_conv.1} parent=11 // pred_check
        %p346 = pneg %p234
      $region46: #{down_conv.1} parent=11 // pred_check_branch
        %348 = sbr.rel (%p346) target = $region48
      $region47: #{down_conv.1} parent=11 // pred_region
        _
      $region48: #{down_conv.1} parent=11 // pred_fallthru
        _
      // Predicated region
      $region49: #{down_conv.1} parent=11 // pred_check
        %p349 = pneg %p255
      $region50: #{down_conv.1} parent=11 // pred_check_branch
        %351 = sbr.rel (%p349) target = $region52
      $region51: #{down_conv.1} parent=11 // pred_region
        _
      $region52: #{down_conv.1} parent=11 // pred_fallthru
        _
    $region12: #{down_conv.1} parent=5 // pred_fallthru
      _
    %p352 = scmp.lt.s32.totalorder %s19, 2
    // Predicated region
    $region53: #{down_conv.1} parent=5 // pred_check
      %p353 = pneg %p352
    $region54: #{down_conv.1} parent=5 // pred_check_branch
      %355 = sbr.rel (%p353) target = $region56
    $region55: #{down_conv.1} parent=5 // pred_region
      // Predicated region
      $region57: #{down_conv.1} parent=55 // pred_check
        %p356 = pneg %p39
      $region58: #{down_conv.1} parent=55 // pred_check_branch
        %358 = sbr.rel (%p356) target = $region60
      $region59: #{down_conv.1} parent=55 // pred_region
        %p359 = scmp.lt.s32.totalorder %s19, 1
        %s360 = scalar_select %p359, %s19, 1
        %s361 = smul.addr %s360, 2
        %s362 = smul.addr %s361, 8
        %s363 = scalar_lea.vmem %s0, %s362
      $region60: #{down_conv.1} parent=55 // pred_fallthru
        _
    $region56: #{down_conv.1} parent=5 // pred_fallthru
      _
    %p364 = scmp.le.s32.totalorder 1, %s19
    %p365 = scmp.lt.s32.totalorder %s19, 3
    %p366 = pnand %p364, %p365
    %p367 = pneg %p366
    // Predicated region
    $region61: #{down_conv.1} parent=5 // pred_check
      _
    $region62: #{down_conv.1} parent=5 // pred_check_branch
      %369 = sbr.rel (%p366) target = $region64
    $region63: #{down_conv.1} parent=5 // pred_region
      %s370 = ssub.s32 %s19, 1
      %p371 = scmp.lt.s32.totalorder %s24, 1
      %s372 = scalar_select %p371, %s24, 1
      %s373 = smul.addr %s372, 2
      %s374 = smul.addr %s373, 8
      %s375 = scalar_lea.vmem %s0, %s374
      %p376 = pneg %p45
      %p377 = pneg %p42
      %p378 = pneg %p66
      %p379 = pneg %p63
      %p380 = pneg %p87
      %p381 = pneg %p84
      %p382 = pneg %p108
      %p383 = pneg %p105
      %p384 = pneg %p129
      %p385 = pneg %p126
      %p386 = pneg %p150
      %p387 = pneg %p147
      %p388 = pneg %p171
      %p389 = pneg %p168
      %p390 = pneg %p192
      %p391 = pneg %p189
      %p392 = pneg %p213
      %p393 = pneg %p210
      %p394 = pneg %p234
      %p395 = pneg %p231
      %p396 = pneg %p255
      %p397 = pneg %p252
      %p398 = pneg %p281
      %p399 = pneg %p278
      %p400 = scmp.lt.s32.totalorder %s24, 1
      %s401 = scalar_select %p400, %s24, 1
      %s402 = smul.addr %s401, 2
      %s403 = smul.addr %s402, 8
      %s404 = scalar_lea.vmem %s11, %s403
      %p405 = pneg %p307
      %p406 = pneg %p304
      %p407 = scmp.lt.s32.totalorder %s24, 1
      %s408 = scalar_select %p407, %s24, 1
      %s409 = smul.addr %s408, 8
      %s410 = scalar_lea.vmem %s12, %s409
      %p411 = scmp.lt.s32.totalorder %s24, 1
      %s412 = scalar_select %p411, %s24, 1
      %s413 = smul.addr %s412, 2
      %s414 = smul.addr %s413, 8
      %s415 = scalar_lea.vmem %s0, %s414
      %p416 = scmp.lt.s32.totalorder %s24, 1
      %s417 = scalar_select %p416, %s24, 1
      %s418 = smul.addr %s417, 2
      %s419 = smul.addr %s418, 8
      %s420 = scalar_lea.vmem %s11, %s419
      %p421 = scmp.lt.s32.totalorder %s24, 1
      %s422 = scalar_select %p421, %s24, 1
      %s423 = smul.addr %s422, 8
      %s424 = scalar_lea.vmem %s12, %s423
      %v425 = vld [vmem:[%s415] sm:$0xff]
      %v426 = vld [vmem:[%s415 + $0x8] sm:$0xff]
      %v427 = vld [vmem:[%s5] sm:$0xff]
      %v428 = vld [vmem:[%s5 + $0x8] sm:$0xff]
      %v429 = vld [vmem:[%s6] sm:$0xff]
      %v430 = vld [vmem:[%s6 + $0x8] sm:$0xff]
      %v431 = vld [vmem:[%s1] sm:$0xff]
      %v432 = vld [vmem:[%s1 + $0x8] sm:$0xff]
      %v433 = vld [vmem:[%s1 + $0x10] sm:$0xff]
      %v434 = vld [vmem:[%s1 + $0x18] sm:$0xff]
      %v435 = vld [vmem:[%s1 + $0x20] sm:$0xff]
      %v436 = vld [vmem:[%s1 + $0x28] sm:$0xff]
      %v437 = vld [vmem:[%s1 + $0x30] sm:$0xff]
      %v438 = vld [vmem:[%s1 + $0x38] sm:$0xff]
      %vm439 = vcmask 523264
      %v441 = vsel %vm439, %v425, 0
      %v444 = vsel %vm439, %v426, 0
      %446 = vmatprep.subr.mxu0 0.0
      %447 = vmatpush1.msra.mxu0 %v431
      %448 = vmatprep.subr.mxu0 0.0
      %449 = vmatpush1.msra.mxu0 %v432
      %450 = vmatprep.subr.mxu0 0.0
      %451 = vmatpush1.msra.mxu0 %v433
      %452 = vmatprep.subr.mxu0 0.0
      %453 = vmatpush1.msra.mxu0 %v434
      %454 = vmatprep.subr.mxu0 0.0
      %455 = vmatpush1.msra.mxu0 %v435
      %456 = vmatprep.subr.mxu0 0.0
      %457 = vmatpush1.msra.mxu0 %v436
      %458 = vmatprep.subr.mxu0 0.0
      %459 = vmatpush1.msra.mxu0 %v437
      %460 = vmatprep.subr.mxu0 0.0
      %461 = vmatpush1.msra.mxu0 %v438
      %462 = vmatprep.subr.mxu0 0.0
      %463 = vmatpush1.msra.mxu0 0.0
      %464 = vmatprep.subr.mxu0 0.0
      %465 = vmatpush1.msra.mxu0 0.0
      %466 = vmatprep.subr.mxu0 0.0
      %467 = vmatpush1.msra.mxu0 0.0
      %468 = vmatprep.subr.mxu0 0.0
      %469 = vmatpush1.msra.mxu0 0.0
      %470 = vmatprep.subr.mxu0 0.0
      %471 = vmatpush1.msra.mxu0 0.0
      %472 = vmatprep.subr.mxu0 0.0
      %473 = vmatpush1.msra.mxu0 0.0
      %474 = vmatprep.subr.mxu0 0.0
      %475 = vmatpush1.msra.mxu0 0.0
      %476 = vmatprep.subr.mxu0 0.0
      %477 = vmatpush1.msra.mxu0 0.0
      %478 = vmatprep.subr.mxu0 0.0
      %479 = vmatpush1.msra.mxu0 0.0
      %480 = vmatprep.subr.mxu0 0.0
      %481 = vmatpush1.msra.mxu0 0.0
      %482 = vmatprep.subr.mxu0 0.0
      %483 = vmatpush1.msra.mxu0 0.0
      %484 = vmatprep.subr.mxu0 0.0
      %485 = vmatpush1.msra.mxu0 0.0
      %486 = vmatprep.subr.mxu0 0.0
      %487 = vmatpush1.msra.mxu0 0.0
      %488 = vmatprep.subr.mxu0 0.0
      %489 = vmatpush1.msra.mxu0 0.0
      %490 = vmatprep.subr.mxu0 0.0
      %491 = vmatpush1.msra.mxu0 0.0
      %492 = vmatprep.subr.mxu0 0.0
      %493 = vmatpush1.msra.mxu0 0.0
      %494 = vmatprep.subr.mxu0 0.0
      %495 = vmatpush1.msra.mxu0 0.0
      %496 = vmatprep.subr.mxu0 0.0
      %497 = vmatpush1.msra.mxu0 0.0
      %498 = vmatprep.subr.mxu0 0.0
      %499 = vmatpush1.msra.mxu0 0.0
      %500 = vmatprep.subr.mxu0 0.0
      %501 = vmatpush1.msra.mxu0 0.0
      %502 = vmatprep.subr.mxu0 0.0
      %503 = vmatpush1.msra.mxu0 0.0
      %504 = vmatprep.subr.mxu0 0.0
      %505 = vmatpush1.msra.mxu0 0.0
      %506 = vmatprep.subr.mxu0 0.0
      %507 = vmatpush1.msra.mxu0 0.0
      %508 = vmatprep.subr.mxu0 0.0
      %509 = vmatpush1.msra.mxu0 0.0
      %510 = vmatprep.mubr.f32.mxu0 0.0
      %511 = vmatmul.mubr.f32.gmra.mrb[0].mxu0 %v441
      %v512 = vpop.f32.mrb[0].mxu0
      %v513 = vadd.f32 0.0, %v512
      %v514 = vpop.f32.mrb[0].mxu0
      %515 = vmatprep.mubr.f32.mxu0 0.0
      %516 = vmatmul.mubr.f32.gmra.mrb[0].mxu0 %v444
      %v517 = vpop.f32.mrb[0].mxu0
      %v518 = vadd.f32 0.0, %v517
      %v519 = vpop.f32.mrb[0].mxu0
      %520 = vdwg.mxu0
      %s521 = scalar_lea.vmem %s1, 64
      %v522 = vld [vmem:[%s521] sm:$0xff]
      %v523 = vld [vmem:[%s521 + $0x8] sm:$0xff]
      %v524 = vld [vmem:[%s521 + $0x10] sm:$0xff]
      %v525 = vld [vmem:[%s521 + $0x18] sm:$0xff]
      %v526 = vld [vmem:[%s521 + $0x20] sm:$0xff]
      %v527 = vld [vmem:[%s521 + $0x28] sm:$0xff]
      %v528 = vld [vmem:[%s521 + $0x30] sm:$0xff]
      %v529 = vld [vmem:[%s521 + $0x38] sm:$0xff]
      %530 = vmatprep.subr.mxu0 0.0
      %531 = vmatpush1.msra.mxu0 %v522
      %532 = vmatprep.subr.mxu0 0.0
      %533 = vmatpush1.msra.mxu0 %v523
      %534 = vmatprep.subr.mxu0 0.0
      %535 = vmatpush1.msra.mxu0 %v524
      %536 = vmatprep.subr.mxu0 0.0
      %537 = vmatpush1.msra.mxu0 %v525
      %538 = vmatprep.subr.mxu0 0.0
      %539 = vmatpush1.msra.mxu0 %v526
      %540 = vmatprep.subr.mxu0 0.0
      %541 = vmatpush1.msra.mxu0 %v527
      %542 = vmatprep.subr.mxu0 0.0
      %543 = vmatpush1.msra.mxu0 %v528
      %544 = vmatprep.subr.mxu0 0.0
      %545 = vmatpush1.msra.mxu0 %v529
      %546 = vmatprep.subr.mxu0 0.0
      %547 = vmatpush1.msra.mxu0 0.0
      %548 = vmatprep.subr.mxu0 0.0
      %549 = vmatpush1.msra.mxu0 0.0
      %550 = vmatprep.subr.mxu0 0.0
      %551 = vmatpush1.msra.mxu0 0.0
      %552 = vmatprep.subr.mxu0 0.0
      %553 = vmatpush1.msra.mxu0 0.0
      %554 = vmatprep.subr.mxu0 0.0
      %555 = vmatpush1.msra.mxu0 0.0
      %556 = vmatprep.subr.mxu0 0.0
      %557 = vmatpush1.msra.mxu0 0.0
      %558 = vmatprep.subr.mxu0 0.0
      %559 = vmatpush1.msra.mxu0 0.0
      %560 = vmatprep.subr.mxu0 0.0
      %561 = vmatpush1.msra.mxu0 0.0
      %562 = vmatprep.subr.mxu0 0.0
      %563 = vmatpush1.msra.mxu0 0.0
      %564 = vmatprep.subr.mxu0 0.0
      %565 = vmatpush1.msra.mxu0 0.0
      %566 = vmatprep.subr.mxu0 0.0
      %567 = vmatpush1.msra.mxu0 0.0
      %568 = vmatprep.subr.mxu0 0.0
      %569 = vmatpush1.msra.mxu0 0.0
      %570 = vmatprep.subr.mxu0 0.0
      %571 = vmatpush1.msra.mxu0 0.0
      %572 = vmatprep.subr.mxu0 0.0
      %573 = vmatpush1.msra.mxu0 0.0
      %574 = vmatprep.subr.mxu0 0.0
      %575 = vmatpush1.msra.mxu0 0.0
      %576 = vmatprep.subr.mxu0 0.0
      %577 = vmatpush1.msra.mxu0 0.0
      %578 = vmatprep.subr.mxu0 0.0
      %579 = vmatpush1.msra.mxu0 0.0
      %580 = vmatprep.subr.mxu0 0.0
      %581 = vmatpush1.msra.mxu0 0.0
      %582 = vmatprep.subr.mxu0 0.0
      %583 = vmatpush1.msra.mxu0 0.0
      %584 = vmatprep.subr.mxu0 0.0
      %585 = vmatpush1.msra.mxu0 0.0
      %586 = vmatprep.subr.mxu0 0.0
      %587 = vmatpush1.msra.mxu0 0.0
      %588 = vmatprep.subr.mxu0 0.0
      %589 = vmatpush1.msra.mxu0 0.0
      %590 = vmatprep.subr.mxu0 0.0
      %591 = vmatpush1.msra.mxu0 0.0
      %592 = vmatprep.subr.mxu0 0.0
      %593 = vmatpush1.msra.mxu0 0.0
      %594 = vmatprep.mubr.f32.mxu0 0.0
      %595 = vmatmul.mubr.f32.gmra.mrb[0].mxu0 %v441
      %v596 = vpop.f32.mrb[0].mxu0
      %v597 = vadd.f32 0.0, %v596
      %v598 = vpop.f32.mrb[0].mxu0
      %599 = vmatprep.mubr.f32.mxu0 0.0
      %600 = vmatmul.mubr.f32.gmra.mrb[0].mxu0 %v444
      %v601 = vpop.f32.mrb[0].mxu0
      %v602 = vadd.f32 0.0, %v601
      %v603 = vpop.f32.mrb[0].mxu0
      %604 = vdwg.mxu0
      %s605 = scalar_lea.vmem %s1, 128
      %v606 = vld [vmem:[%s605] sm:$0xff]
      %v607 = vld [vmem:[%s605 + $0x8] sm:$0xff]
      %v608 = vld [vmem:[%s605 + $0x10] sm:$0xff]
      %v609 = vld [vmem:[%s605 + $0x18] sm:$0xff]
      %v610 = vld [vmem:[%s605 + $0x20] sm:$0xff]
      %v611 = vld [vmem:[%s605 + $0x28] sm:$0xff]
      %v612 = vld [vmem:[%s605 + $0x30] sm:$0xff]
      %v613 = vld [vmem:[%s605 + $0x38] sm:$0xff]
      %614 = vmatprep.subr.mxu0 0.0
      %615 = vmatpush1.msra.mxu0 %v606
      %616 = vmatprep.subr.mxu0 0.0
      %617 = vmatpush1.msra.mxu0 %v607
      %618 = vmatprep.subr.mxu0 0.0
      %619 = vmatpush1.msra.mxu0 %v608
      %620 = vmatprep.subr.mxu0 0.0
      %621 = vmatpush1.msra.mxu0 %v609
      %622 = vmatprep.subr.mxu0 0.0
      %623 = vmatpush1.msra.mxu0 %v610
      %624 = vmatprep.subr.mxu0 0.0
      %625 = vmatpush1.msra.mxu0 %v611
      %626 = vmatprep.subr.mxu0 0.0
      %627 = vmatpush1.msra.mxu0 %v612
      %628 = vmatprep.subr.mxu0 0.0
      %629 = vmatpush1.msra.mxu0 %v613
      %630 = vmatprep.subr.mxu0 0.0
      %631 = vmatpush1.msra.mxu0 0.0
      %632 = vmatprep.subr.mxu0 0.0
      %633 = vmatpush1.msra.mxu0 0.0
      %634 = vmatprep.subr.mxu0 0.0
      %635 = vmatpush1.msra.mxu0 0.0
      %636 = vmatprep.subr.mxu0 0.0
      %637 = vmatpush1.msra.mxu0 0.0
      %638 = vmatprep.subr.mxu0 0.0
      %639 = vmatpush1.msra.mxu0 0.0
      %640 = vmatprep.subr.mxu0 0.0
      %641 = vmatpush1.msra.mxu0 0.0
      %642 = vmatprep.subr.mxu0 0.0
      %643 = vmatpush1.msra.mxu0 0.0
      %644 = vmatprep.subr.mxu0 0.0
      %645 = vmatpush1.msra.mxu0 0.0
      %646 = vmatprep.subr.mxu0 0.0
      %647 = vmatpush1.msra.mxu0 0.0
      %648 = vmatprep.subr.mxu0 0.0
      %649 = vmatpush1.msra.mxu0 0.0
      %650 = vmatprep.subr.mxu0 0.0
      %651 = vmatpush1.msra.mxu0 0.0
      %652 = vmatprep.subr.mxu0 0.0
      %653 = vmatpush1.msra.mxu0 0.0
      %654 = vmatprep.subr.mxu0 0.0
      %655 = vmatpush1.msra.mxu0 0.0
      %656 = vmatprep.subr.mxu0 0.0
      %657 = vmatpush1.msra.mxu0 0.0
      %658 = vmatprep.subr.mxu0 0.0
      %659 = vmatpush1.msra.mxu0 0.0
      %660 = vmatprep.subr.mxu0 0.0
      %661 = vmatpush1.msra.mxu0 0.0
      %662 = vmatprep.subr.mxu0 0.0
      %663 = vmatpush1.msra.mxu0 0.0
      %664 = vmatprep.subr.mxu0 0.0
      %665 = vmatpush1.msra.mxu0 0.0
      %666 = vmatprep.subr.mxu0 0.0
      %667 = vmatpush1.msra.mxu0 0.0
      %668 = vmatprep.subr.mxu0 0.0
      %669 = vmatpush1.msra.mxu0 0.0
      %670 = vmatprep.subr.mxu0 0.0
      %671 = vmatpush1.msra.mxu0 0.0
      %672 = vmatprep.subr.mxu0 0.0
      %673 = vmatpush1.msra.mxu0 0.0
      %674 = vmatprep.subr.mxu0 0.0
      %675 = vmatpush1.msra.mxu0 0.0
      %676 = vmatprep.subr.mxu0 0.0
      %677 = vmatpush1.msra.mxu0 0.0
      %678 = vmatprep.mubr.f32.mxu0 0.0
      %679 = vmatmul.mubr.f32.gmra.mrb[0].mxu0 %v441
      %v680 = vpop.f32.mrb[0].mxu0
      %v681 = vadd.f32 0.0, %v680
      %v682 = vpop.f32.mrb[0].mxu0
      %683 = vmatprep.mubr.f32.mxu0 0.0
      %684 = vmatmul.mubr.f32.gmra.mrb[0].mxu0 %v444
      %v685 = vpop.f32.mrb[0].mxu0
      %v686 = vadd.f32 0.0, %v685
      %v687 = vpop.f32.mrb[0].mxu0
      %688 = vdwg.mxu0
      %vm689 = vcmask 130048
      %v691 = vsel %vm689, %v427, 0
      %v694 = vsel %vm689, %v428, 0
      %696 = vmatprep.subr.mxu0 0.0
      %697 = vmatpush1.msra.mxu0 %v513
      %698 = vmatprep.subr.mxu0 0.0
      %699 = vmatpush1.msra.mxu0 %v518
      %700 = vmatprep.subr.mxu0 0.0
      %701 = vmatpush1.msra.mxu0 0.0
      %702 = vmatprep.subr.mxu0 0.0
      %703 = vmatpush1.msra.mxu0 0.0
      %704 = vmatprep.subr.mxu0 0.0
      %705 = vmatpush1.msra.mxu0 0.0
      %706 = vmatprep.subr.mxu0 0.0
      %707 = vmatpush1.msra.mxu0 0.0
      %708 = vmatprep.subr.mxu0 0.0
      %709 = vmatpush1.msra.mxu0 0.0
      %710 = vmatprep.subr.mxu0 0.0
      %711 = vmatpush1.msra.mxu0 0.0
      %712 = vmatprep.subr.mxu0 0.0
      %713 = vmatpush1.msra.mxu0 0.0
      %714 = vmatprep.subr.mxu0 0.0
      %715 = vmatpush1.msra.mxu0 0.0
      %716 = vmatprep.subr.mxu0 0.0
      %717 = vmatpush1.msra.mxu0 0.0
      %718 = vmatprep.subr.mxu0 0.0
      %719 = vmatpush1.msra.mxu0 0.0
      %720 = vmatprep.subr.mxu0 0.0
      %721 = vmatpush1.msra.mxu0 0.0
      %722 = vmatprep.subr.mxu0 0.0
      %723 = vmatpush1.msra.mxu0 0.0
      %724 = vmatprep.subr.mxu0 0.0
      %725 = vmatpush1.msra.mxu0 0.0
      %726 = vmatprep.subr.mxu0 0.0
      %727 = vmatpush1.msra.mxu0 0.0
      %728 = vmatprep.subr.mxu0 0.0
      %729 = vmatpush1.msra.mxu0 0.0
      %730 = vmatprep.subr.mxu0 0.0
      %731 = vmatpush1.msra.mxu0 0.0
      %732 = vmatprep.subr.mxu0 0.0
      %733 = vmatpush1.msra.mxu0 0.0
      %734 = vmatprep.subr.mxu0 0.0
      %735 = vmatpush1.msra.mxu0 0.0
      %736 = vmatprep.subr.mxu0 0.0
      %737 = vmatpush1.msra.mxu0 0.0
      %738 = vmatprep.subr.mxu0 0.0
      %739 = vmatpush1.msra.mxu0 0.0
      %740 = vmatprep.subr.mxu0 0.0
      %741 = vmatpush1.msra.mxu0 0.0
      %742 = vmatprep.subr.mxu0 0.0
      %743 = vmatpush1.msra.mxu0 0.0
      %744 = vmatprep.subr.mxu0 0.0
      %745 = vmatpush1.msra.mxu0 0.0
      %746 = vmatprep.subr.mxu0 0.0
      %747 = vmatpush1.msra.mxu0 0.0
      %748 = vmatprep.subr.mxu0 0.0
      %749 = vmatpush1.msra.mxu0 0.0
      %750 = vmatprep.subr.mxu0 0.0
      %751 = vmatpush1.msra.mxu0 0.0
      %752 = vmatprep.subr.mxu0 0.0
      %753 = vmatpush1.msra.mxu0 0.0
      %754 = vmatprep.subr.mxu0 0.0
      %755 = vmatpush1.msra.mxu0 0.0
      %756 = vmatprep.subr.mxu0 0.0
      %757 = vmatpush1.msra.mxu0 0.0
      %758 = vmatprep.subr.mxu0 0.0
      %759 = vmatpush1.msra.mxu0 0.0
      %760 = vmatprep.mubr.f32.mxu0 0.0
      %761 = vmatmul.mubr.f32.gmra.mrb[0].mxu0 %v691
      %v762 = vpop.f32.mrb[0].mxu0
      %v763 = vadd.f32 %v597, %v762
      %v764 = vpop.f32.mrb[0].mxu0
      %765 = vmatprep.mubr.f32.mxu0 0.0
      %766 = vmatmul.mubr.f32.gmra.mrb[0].mxu0 %v694
      %v767 = vpop.f32.mrb[0].mxu0
      %v768 = vadd.f32 %v602, %v767
      %v769 = vpop.f32.mrb[0].mxu0
      %770 = vdwg.mxu0
      %v772 = vsel %vm689, %v429, 0
      %v775 = vsel %vm689, %v430, 0
      %777 = vmatprep.subr.mxu0 0.0
      %778 = vmatpush1.msra.mxu0 %v681
      %779 = vmatprep.subr.mxu0 0.0
      %780 = vmatpush1.msra.mxu0 %v686
      %781 = vmatprep.subr.mxu0 0.0
      %782 = vmatpush1.msra.mxu0 0.0
      %783 = vmatprep.subr.mxu0 0.0
      %784 = vmatpush1.msra.mxu0 0.0
      %785 = vmatprep.subr.mxu0 0.0
      %786 = vmatpush1.msra.mxu0 0.0
      %787 = vmatprep.subr.mxu0 0.0
      %788 = vmatpush1.msra.mxu0 0.0
      %789 = vmatprep.subr.mxu0 0.0
      %790 = vmatpush1.msra.mxu0 0.0
      %791 = vmatprep.subr.mxu0 0.0
      %792 = vmatpush1.msra.mxu0 0.0
      %793 = vmatprep.subr.mxu0 0.0
      %794 = vmatpush1.msra.mxu0 0.0
      %795 = vmatprep.subr.mxu0 0.0
      %796 = vmatpush1.msra.mxu0 0.0
      %797 = vmatprep.subr.mxu0 0.0
      %798 = vmatpush1.msra.mxu0 0.0
      %799 = vmatprep.subr.mxu0 0.0
      %800 = vmatpush1.msra.mxu0 0.0
      %801 = vmatprep.subr.mxu0 0.0
      %802 = vmatpush1.msra.mxu0 0.0
      %803 = vmatprep.subr.mxu0 0.0
      %804 = vmatpush1.msra.mxu0 0.0
      %805 = vmatprep.subr.mxu0 0.0
      %806 = vmatpush1.msra.mxu0 0.0
      %807 = vmatprep.subr.mxu0 0.0
      %808 = vmatpush1.msra.mxu0 0.0
      %809 = vmatprep.subr.mxu0 0.0
      %810 = vmatpush1.msra.mxu0 0.0
      %811 = vmatprep.subr.mxu0 0.0
      %812 = vmatpush1.msra.mxu0 0.0
      %813 = vmatprep.subr.mxu0 0.0
      %814 = vmatpush1.msra.mxu0 0.0
      %815 = vmatprep.subr.mxu0 0.0
      %816 = vmatpush1.msra.mxu0 0.0
      %817 = vmatprep.subr.mxu0 0.0
      %818 = vmatpush1.msra.mxu0 0.0
      %819 = vmatprep.subr.mxu0 0.0
      %820 = vmatpush1.msra.mxu0 0.0
      %821 = vmatprep.subr.mxu0 0.0
      %822 = vmatpush1.msra.mxu0 0.0
      %823 = vmatprep.subr.mxu0 0.0
      %824 = vmatpush1.msra.mxu0 0.0
      %825 = vmatprep.subr.mxu0 0.0
      %826 = vmatpush1.msra.mxu0 0.0
      %827 = vmatprep.subr.mxu0 0.0
      %828 = vmatpush1.msra.mxu0 0.0
      %829 = vmatprep.subr.mxu0 0.0
      %830 = vmatpush1.msra.mxu0 0.0
      %831 = vmatprep.subr.mxu0 0.0
      %832 = vmatpush1.msra.mxu0 0.0
      %833 = vmatprep.subr.mxu0 0.0
      %834 = vmatpush1.msra.mxu0 0.0
      %835 = vmatprep.subr.mxu0 0.0
      %836 = vmatpush1.msra.mxu0 0.0
      %837 = vmatprep.subr.mxu0 0.0
      %838 = vmatpush1.msra.mxu0 0.0
      %839 = vmatprep.subr.mxu0 0.0
      %840 = vmatpush1.msra.mxu0 0.0
      %841 = vmatprep.mubr.f32.mxu0 0.0
      %842 = vmatmul.mubr.f32.gmra.mrb[0].mxu0 %v772
      %v843 = vpop.f32.mrb[0].mxu0
      %v844 = vadd.f32 0.0, %v843
      %v845 = vpop.f32.mrb[0].mxu0
      %846 = vmatprep.mubr.f32.mxu0 0.0
      %847 = vmatmul.mubr.f32.gmra.mrb[0].mxu0 %v775
      %v848 = vpop.f32.mrb[0].mxu0
      %v849 = vadd.f32 0.0, %v848
      %v850 = vpop.f32.mrb[0].mxu0
      %851 = vdwg.mxu0
      %v852 = vadd.f32 %v763, %v844
      %v853 = vadd.f32 %v768, %v849
      %v854 = vld [vmem:[%s2] sm:$0x1]
      %v856 = vlaneseq
      %v857 = vshrl.u32 %v856, 7
      %v858 = vsub.s32 0, %v857
      %v859 = vrot.slane %v854, %v858
      %v861 = vadd.f32 %v852, %v859
      %v862 = vadd.f32 %v853, %v859
      %v863 = vmax.f32 %v861, 0.0
      %v864 = vmax.f32 %v862, 0.0
      %v865 = vld [vmem:[%s3] sm:$0xff]
      %v866 = vld [vmem:[%s3 + $0x8] sm:$0xff]
      %v867 = vld [vmem:[%s3 + $0x10] sm:$0xff]
      %v868 = vld [vmem:[%s3 + $0x18] sm:$0xff]
      %v869 = vld [vmem:[%s3 + $0x20] sm:$0xff]
      %v870 = vld [vmem:[%s3 + $0x28] sm:$0xff]
      %v871 = vld [vmem:[%s3 + $0x30] sm:$0xff]
      %v872 = vld [vmem:[%s3 + $0x38] sm:$0xff]
      %v873 = vld [vmem:[%s3 + $0x40] sm:$0xff]
      %v874 = vld [vmem:[%s3 + $0x48] sm:$0xff]
      %v875 = vld [vmem:[%s3 + $0x50] sm:$0xff]
      %v876 = vld [vmem:[%s3 + $0x58] sm:$0xff]
      %v877 = vld [vmem:[%s3 + $0x60] sm:$0xff]
      %v878 = vld [vmem:[%s3 + $0x68] sm:$0xff]
      %v879 = vld [vmem:[%s3 + $0x70] sm:$0xff]
      %v880 = vld [vmem:[%s3 + $0x78] sm:$0xff]
      %881 = vmatprep.subr.mxu0 0.0
      %882 = vmatpush1.msra.mxu0 %v865
      %883 = vmatprep.subr.mxu0 0.0
      %884 = vmatpush1.msra.mxu0 %v866
      %885 = vmatprep.subr.mxu0 0.0
      %886 = vmatpush1.msra.mxu0 %v867
      %887 = vmatprep.subr.mxu0 0.0
      %888 = vmatpush1.msra.mxu0 %v868
      %889 = vmatprep.subr.mxu0 0.0
      %890 = vmatpush1.msra.mxu0 %v869
      %891 = vmatprep.subr.mxu0 0.0
      %892 = vmatpush1.msra.mxu0 %v870
      %893 = vmatprep.subr.mxu0 0.0
      %894 = vmatpush1.msra.mxu0 %v871
      %895 = vmatprep.subr.mxu0 0.0
      %896 = vmatpush1.msra.mxu0 %v872
      %897 = vmatprep.subr.mxu0 0.0
      %898 = vmatpush1.msra.mxu0 %v873
      %899 = vmatprep.subr.mxu0 0.0
      %900 = vmatpush1.msra.mxu0 %v874
      %901 = vmatprep.subr.mxu0 0.0
      %902 = vmatpush1.msra.mxu0 %v875
      %903 = vmatprep.subr.mxu0 0.0
      %904 = vmatpush1.msra.mxu0 %v876
      %905 = vmatprep.subr.mxu0 0.0
      %906 = vmatpush1.msra.mxu0 %v877
      %907 = vmatprep.subr.mxu0 0.0
      %908 = vmatpush1.msra.mxu0 %v878
      %909 = vmatprep.subr.mxu0 0.0
      %910 = vmatpush1.msra.mxu0 %v879
      %911 = vmatprep.subr.mxu0 0.0
      %912 = vmatpush1.msra.mxu0 %v880
      %913 = vmatprep.subr.mxu0 0.0
      %914 = vmatpush1.msra.mxu0 0.0
      %915 = vmatprep.subr.mxu0 0.0
      %916 = vmatpush1.msra.mxu0 0.0
      %917 = vmatprep.subr.mxu0 0.0
      %918 = vmatpush1.msra.mxu0 0.0
      %919 = vmatprep.subr.mxu0 0.0
      %920 = vmatpush1.msra.mxu0 0.0
      %921 = vmatprep.subr.mxu0 0.0
      %922 = vmatpush1.msra.mxu0 0.0
      %923 = vmatprep.subr.mxu0 0.0
      %924 = vmatpush1.msra.mxu0 0.0
      %925 = vmatprep.subr.mxu0 0.0
      %926 = vmatpush1.msra.mxu0 0.0
      %927 = vmatprep.subr.mxu0 0.0
      %928 = vmatpush1.msra.mxu0 0.0
      %929 = vmatprep.subr.mxu0 0.0
      %930 = vmatpush1.msra.mxu0 0.0
      %931 = vmatprep.subr.mxu0 0.0
      %932 = vmatpush1.msra.mxu0 0.0
      %933 = vmatprep.subr.mxu0 0.0
      %934 = vmatpush1.msra.mxu0 0.0
      %935 = vmatprep.subr.mxu0 0.0
      %936 = vmatpush1.msra.mxu0 0.0
      %937 = vmatprep.subr.mxu0 0.0
      %938 = vmatpush1.msra.mxu0 0.0
      %939 = vmatprep.subr.mxu0 0.0
      %940 = vmatpush1.msra.mxu0 0.0
      %941 = vmatprep.subr.mxu0 0.0
      %942 = vmatpush1.msra.mxu0 0.0
      %943 = vmatprep.subr.mxu0 0.0
      %944 = vmatpush1.msra.mxu0 0.0
      %945 = vmatprep.mubr.f32.mxu0 0.0
      %946 = vmatmul.mubr.f32.gmra.mrb[0].mxu0 %v863
      %v947 = vpop.f32.mrb[0].mxu0
      %v948 = vadd.f32 0.0, %v947
      %v949 = vpop.f32.mrb[0].mxu0
      %950 = vmatprep.mubr.f32.mxu0 0.0
      %951 = vmatmul.mubr.f32.gmra.mrb[0].mxu0 %v864
      %v952 = vpop.f32.mrb[0].mxu0
      %v953 = vadd.f32 0.0, %v952
      %v954 = vpop.f32.mrb[0].mxu0
      %955 = vdwg.mxu0
      %s956 = scalar_lea.vmem %s3, 128
      %v957 = vld [vmem:[%s956] sm:$0xff]
      %v958 = vld [vmem:[%s956 + $0x8] sm:$0xff]
      %v959 = vld [vmem:[%s956 + $0x10] sm:$0xff]
      %v960 = vld [vmem:[%s956 + $0x18] sm:$0xff]
      %v961 = vld [vmem:[%s956 + $0x20] sm:$0xff]
      %v962 = vld [vmem:[%s956 + $0x28] sm:$0xff]
      %v963 = vld [vmem:[%s956 + $0x30] sm:$0xff]
      %v964 = vld [vmem:[%s956 + $0x38] sm:$0xff]
      %v965 = vld [vmem:[%s956 + $0x40] sm:$0xff]
      %v966 = vld [vmem:[%s956 + $0x48] sm:$0xff]
      %v967 = vld [vmem:[%s956 + $0x50] sm:$0xff]
      %v968 = vld [vmem:[%s956 + $0x58] sm:$0xff]
      %v969 = vld [vmem:[%s956 + $0x60] sm:$0xff]
      %v970 = vld [vmem:[%s956 + $0x68] sm:$0xff]
      %v971 = vld [vmem:[%s956 + $0x70] sm:$0xff]
      %v972 = vld [vmem:[%s956 + $0x78] sm:$0xff]
      %973 = vmatprep.subr.mxu0 0.0
      %974 = vmatpush1.msra.mxu0 %v957
      %975 = vmatprep.subr.mxu0 0.0
      %976 = vmatpush1.msra.mxu0 %v958
      %977 = vmatprep.subr.mxu0 0.0
      %978 = vmatpush1.msra.mxu0 %v959
      %979 = vmatprep.subr.mxu0 0.0
      %980 = vmatpush1.msra.mxu0 %v960
      %981 = vmatprep.subr.mxu0 0.0
      %982 = vmatpush1.msra.mxu0 %v961
      %983 = vmatprep.subr.mxu0 0.0
      %984 = vmatpush1.msra.mxu0 %v962
      %985 = vmatprep.subr.mxu0 0.0
      %986 = vmatpush1.msra.mxu0 %v963
      %987 = vmatprep.subr.mxu0 0.0
      %988 = vmatpush1.msra.mxu0 %v964
      %989 = vmatprep.subr.mxu0 0.0
      %990 = vmatpush1.msra.mxu0 %v965
      %991 = vmatprep.subr.mxu0 0.0
      %992 = vmatpush1.msra.mxu0 %v966
      %993 = vmatprep.subr.mxu0 0.0
      %994 = vmatpush1.msra.mxu0 %v967
      %995 = vmatprep.subr.mxu0 0.0
      %996 = vmatpush1.msra.mxu0 %v968
      %997 = vmatprep.subr.mxu0 0.0
      %998 = vmatpush1.msra.mxu0 %v969
      %999 = vmatprep.subr.mxu0 0.0
      %1000 = vmatpush1.msra.mxu0 %v970
      %1001 = vmatprep.subr.mxu0 0.0
      %1002 = vmatpush1.msra.mxu0 %v971
      %1003 = vmatprep.subr.mxu0 0.0
      %1004 = vmatpush1.msra.mxu0 %v972
      %1005 = vmatprep.subr.mxu0 0.0
      %1006 = vmatpush1.msra.mxu0 0.0
      %1007 = vmatprep.subr.mxu0 0.0
      %1008 = vmatpush1.msra.mxu0 0.0
      %1009 = vmatprep.subr.mxu0 0.0
      %1010 = vmatpush1.msra.mxu0 0.0
      %1011 = vmatprep.subr.mxu0 0.0
      %1012 = vmatpush1.msra.mxu0 0.0
      %1013 = vmatprep.subr.mxu0 0.0
      %1014 = vmatpush1.msra.mxu0 0.0
      %1015 = vmatprep.subr.mxu0 0.0
      %1016 = vmatpush1.msra.mxu0 0.0
      %1017 = vmatprep.subr.mxu0 0.0
      %1018 = vmatpush1.msra.mxu0 0.0
      %1019 = vmatprep.subr.mxu0 0.0
      %1020 = vmatpush1.msra.mxu0 0.0
      %1021 = vmatprep.subr.mxu0 0.0
      %1022 = vmatpush1.msra.mxu0 0.0
      %1023 = vmatprep.subr.mxu0 0.0
      %1024 = vmatpush1.msra.mxu0 0.0
      %1025 = vmatprep.subr.mxu0 0.0
      %1026 = vmatpush1.msra.mxu0 0.0
      %1027 = vmatprep.subr.mxu0 0.0
      %1028 = vmatpush1.msra.mxu0 0.0
      %1029 = vmatprep.subr.mxu0 0.0
      %1030 = vmatpush1.msra.mxu0 0.0
      %1031 = vmatprep.subr.mxu0 0.0
      %1032 = vmatpush1.msra.mxu0 0.0
      %1033 = vmatprep.subr.mxu0 0.0
      %1034 = vmatpush1.msra.mxu0 0.0
      %1035 = vmatprep.subr.mxu0 0.0
      %1036 = vmatpush1.msra.mxu0 0.0
      %1037 = vmatprep.mubr.f32.mxu0 0.0
      %1038 = vmatmul.mubr.f32.gmra.mrb[0].mxu0 %v863
      %v1039 = vpop.f32.mrb[0].mxu0
      %v1040 = vadd.f32 0.0, %v1039
      %v1041 = vpop.f32.mrb[0].mxu0
      %1042 = vmatprep.mubr.f32.mxu0 0.0
      %1043 = vmatmul.mubr.f32.gmra.mrb[0].mxu0 %v864
      %v1044 = vpop.f32.mrb[0].mxu0
      %v1045 = vadd.f32 0.0, %v1044
      %v1046 = vpop.f32.mrb[0].mxu0
      %1047 = vdwg.mxu0
      %s1048 = scalar_lea.vmem %s3, 256
      %v1049 = vld [vmem:[%s1048] sm:$0xff]
      %v1050 = vld [vmem:[%s1048 + $0x8] sm:$0xff]
      %v1051 = vld [vmem:[%s1048 + $0x10] sm:$0xff]
      %v1052 = vld [vmem:[%s1048 + $0x18] sm:$0xff]
      %v1053 = vld [vmem:[%s1048 + $0x20] sm:$0xff]
      %v1054 = vld [vmem:[%s1048 + $0x28] sm:$0xff]
      %v1055 = vld [vmem:[%s1048 + $0x30] sm:$0xff]
      %v1056 = vld [vmem:[%s1048 + $0x38] sm:$0xff]
      %v1057 = vld [vmem:[%s1048 + $0x40] sm:$0xff]
      %v1058 = vld [vmem:[%s1048 + $0x48] sm:$0xff]
      %v1059 = vld [vmem:[%s1048 + $0x50] sm:$0xff]
      %v1060 = vld [vmem:[%s1048 + $0x58] sm:$0xff]
      %v1061 = vld [vmem:[%s1048 + $0x60] sm:$0xff]
      %v1062 = vld [vmem:[%s1048 + $0x68] sm:$0xff]
      %v1063 = vld [vmem:[%s1048 + $0x70] sm:$0xff]
      %v1064 = vld [vmem:[%s1048 + $0x78] sm:$0xff]
      %1065 = vmatprep.subr.mxu0 0.0
      %1066 = vmatpush1.msra.mxu0 %v1049
      %1067 = vmatprep.subr.mxu0 0.0
      %1068 = vmatpush1.msra.mxu0 %v1050
      %1069 = vmatprep.subr.mxu0 0.0
      %1070 = vmatpush1.msra.mxu0 %v1051
      %1071 = vmatprep.subr.mxu0 0.0
      %1072 = vmatpush1.msra.mxu0 %v1052
      %1073 = vmatprep.subr.mxu0 0.0
      %1074 = vmatpush1.msra.mxu0 %v1053
      %1075 = vmatprep.subr.mxu0 0.0
      %1076 = vmatpush1.msra.mxu0 %v1054
      %1077 = vmatprep.subr.mxu0 0.0
      %1078 = vmatpush1.msra.mxu0 %v1055
      %1079 = vmatprep.subr.mxu0 0.0
      %1080 = vmatpush1.msra.mxu0 %v1056
      %1081 = vmatprep.subr.mxu0 0.0
      %1082 = vmatpush1.msra.mxu0 %v1057
      %1083 = vmatprep.subr.mxu0 0.0
      %1084 = vmatpush1.msra.mxu0 %v1058
      %1085 = vmatprep.subr.mxu0 0.0
      %1086 = vmatpush1.msra.mxu0 %v1059
      %1087 = vmatprep.subr.mxu0 0.0
      %1088 = vmatpush1.msra.mxu0 %v1060
      %1089 = vmatprep.subr.mxu0 0.0
      %1090 = vmatpush1.msra.mxu0 %v1061
      %1091 = vmatprep.subr.mxu0 0.0
      %1092 = vmatpush1.msra.mxu0 %v1062
      %1093 = vmatprep.subr.mxu0 0.0
      %1094 = vmatpush1.msra.mxu0 %v1063
      %1095 = vmatprep.subr.mxu0 0.0
      %1096 = vmatpush1.msra.mxu0 %v1064
      %1097 = vmatprep.subr.mxu0 0.0
      %1098 = vmatpush1.msra.mxu0 0.0
      %1099 = vmatprep.subr.mxu0 0.0
      %1100 = vmatpush1.msra.mxu0 0.0
      %1101 = vmatprep.subr.mxu0 0.0
      %1102 = vmatpush1.msra.mxu0 0.0
      %1103 = vmatprep.subr.mxu0 0.0
      %1104 = vmatpush1.msra.mxu0 0.0
      %1105 = vmatprep.subr.mxu0 0.0
      %1106 = vmatpush1.msra.mxu0 0.0
      %1107 = vmatprep.subr.mxu0 0.0
      %1108 = vmatpush1.msra.mxu0 0.0
      %1109 = vmatprep.subr.mxu0 0.0
      %1110 = vmatpush1.msra.mxu0 0.0
      %1111 = vmatprep.subr.mxu0 0.0
      %1112 = vmatpush1.msra.mxu0 0.0
      %1113 = vmatprep.subr.mxu0 0.0
      %1114 = vmatpush1.msra.mxu0 0.0
      %1115 = vmatprep.subr.mxu0 0.0
      %1116 = vmatpush1.msra.mxu0 0.0
      %1117 = vmatprep.subr.mxu0 0.0
      %1118 = vmatpush1.msra.mxu0 0.0
      %1119 = vmatprep.subr.mxu0 0.0
      %1120 = vmatpush1.msra.mxu0 0.0
      %1121 = vmatprep.subr.mxu0 0.0
      %1122 = vmatpush1.msra.mxu0 0.0
      %1123 = vmatprep.subr.mxu0 0.0
      %1124 = vmatpush1.msra.mxu0 0.0
      %1125 = vmatprep.subr.mxu0 0.0
      %1126 = vmatpush1.msra.mxu0 0.0
      %1127 = vmatprep.subr.mxu0 0.0
      %1128 = vmatpush1.msra.mxu0 0.0
      %1129 = vmatprep.mubr.f32.mxu0 0.0
      %1130 = vmatmul.mubr.f32.gmra.mrb[0].mxu0 %v863
      %v1131 = vpop.f32.mrb[0].mxu0
      %v1132 = vadd.f32 0.0, %v1131
      %v1133 = vpop.f32.mrb[0].mxu0
      %1134 = vmatprep.mubr.f32.mxu0 0.0
      %1135 = vmatmul.mubr.f32.gmra.mrb[0].mxu0 %v864
      %v1136 = vpop.f32.mrb[0].mxu0
      %v1137 = vadd.f32 0.0, %v1136
      %v1138 = vpop.f32.mrb[0].mxu0
      %1139 = vdwg.mxu0
      %1140 = vmatprep.subr.mxu0 0.0
      %1141 = vmatpush1.msra.mxu0 %v948
      %1142 = vmatprep.subr.mxu0 0.0
      %1143 = vmatpush1.msra.mxu0 %v953
      %1144 = vmatprep.subr.mxu0 0.0
      %1145 = vmatpush1.msra.mxu0 0.0
      %1146 = vmatprep.subr.mxu0 0.0
      %1147 = vmatpush1.msra.mxu0 0.0
      %1148 = vmatprep.subr.mxu0 0.0
      %1149 = vmatpush1.msra.mxu0 0.0
      %1150 = vmatprep.subr.mxu0 0.0
      %1151 = vmatpush1.msra.mxu0 0.0
      %1152 = vmatprep.subr.mxu0 0.0
      %1153 = vmatpush1.msra.mxu0 0.0
      %1154 = vmatprep.subr.mxu0 0.0
      %1155 = vmatpush1.msra.mxu0 0.0
      %1156 = vmatprep.subr.mxu0 0.0
      %1157 = vmatpush1.msra.mxu0 0.0
      %1158 = vmatprep.subr.mxu0 0.0
      %1159 = vmatpush1.msra.mxu0 0.0
      %1160 = vmatprep.subr.mxu0 0.0
      %1161 = vmatpush1.msra.mxu0 0.0
      %1162 = vmatprep.subr.mxu0 0.0
      %1163 = vmatpush1.msra.mxu0 0.0
      %1164 = vmatprep.subr.mxu0 0.0
      %1165 = vmatpush1.msra.mxu0 0.0
      %1166 = vmatprep.subr.mxu0 0.0
      %1167 = vmatpush1.msra.mxu0 0.0
      %1168 = vmatprep.subr.mxu0 0.0
      %1169 = vmatpush1.msra.mxu0 0.0
      %1170 = vmatprep.subr.mxu0 0.0
      %1171 = vmatpush1.msra.mxu0 0.0
      %1172 = vmatprep.subr.mxu0 0.0
      %1173 = vmatpush1.msra.mxu0 0.0
      %1174 = vmatprep.subr.mxu0 0.0
      %1175 = vmatpush1.msra.mxu0 0.0
      %1176 = vmatprep.subr.mxu0 0.0
      %1177 = vmatpush1.msra.mxu0 0.0
      %1178 = vmatprep.subr.mxu0 0.0
      %1179 = vmatpush1.msra.mxu0 0.0
      %1180 = vmatprep.subr.mxu0 0.0
      %1181 = vmatpush1.msra.mxu0 0.0
      %1182 = vmatprep.subr.mxu0 0.0
      %1183 = vmatpush1.msra.mxu0 0.0
      %1184 = vmatprep.subr.mxu0 0.0
      %1185 = vmatpush1.msra.mxu0 0.0
      %1186 = vmatprep.subr.mxu0 0.0
      %1187 = vmatpush1.msra.mxu0 0.0
      %1188 = vmatprep.subr.mxu0 0.0
      %1189 = vmatpush1.msra.mxu0 0.0
      %1190 = vmatprep.subr.mxu0 0.0
      %1191 = vmatpush1.msra.mxu0 0.0
      %1192 = vmatprep.subr.mxu0 0.0
      %1193 = vmatpush1.msra.mxu0 0.0
      %1194 = vmatprep.subr.mxu0 0.0
      %1195 = vmatpush1.msra.mxu0 0.0
      %1196 = vmatprep.subr.mxu0 0.0
      %1197 = vmatpush1.msra.mxu0 0.0
      %1198 = vmatprep.subr.mxu0 0.0
      %1199 = vmatpush1.msra.mxu0 0.0
      %1200 = vmatprep.subr.mxu0 0.0
      %1201 = vmatpush1.msra.mxu0 0.0
      %1202 = vmatprep.subr.mxu0 0.0
      %1203 = vmatpush1.msra.mxu0 0.0
      %1204 = vmatprep.mubr.f32.mxu0 0.0
      %1205 = vmatmul.mubr.f32.gmra.mrb[0].mxu0 %v691
      %v1206 = vpop.f32.mrb[0].mxu0
      %v1207 = vadd.f32 %v1040, %v1206
      %v1208 = vpop.f32.mrb[0].mxu0
      %1209 = vmatprep.mubr.f32.mxu0 0.0
      %1210 = vmatmul.mubr.f32.gmra.mrb[0].mxu0 %v694
      %v1211 = vpop.f32.mrb[0].mxu0
      %v1212 = vadd.f32 %v1045, %v1211
      %v1213 = vpop.f32.mrb[0].mxu0
      %1214 = vdwg.mxu0
      %1215 = vmatprep.subr.mxu0 0.0
      %1216 = vmatpush1.msra.mxu0 %v1132
      %1217 = vmatprep.subr.mxu0 0.0
      %1218 = vmatpush1.msra.mxu0 %v1137
      %1219 = vmatprep.subr.mxu0 0.0
      %1220 = vmatpush1.msra.mxu0 0.0
      %1221 = vmatprep.subr.mxu0 0.0
      %1222 = vmatpush1.msra.mxu0 0.0
      %1223 = vmatprep.subr.mxu0 0.0
      %1224 = vmatpush1.msra.mxu0 0.0
      %1225 = vmatprep.subr.mxu0 0.0
      %1226 = vmatpush1.msra.mxu0 0.0
      %1227 = vmatprep.subr.mxu0 0.0
      %1228 = vmatpush1.msra.mxu0 0.0
      %1229 = vmatprep.subr.mxu0 0.0
      %1230 = vmatpush1.msra.mxu0 0.0
      %1231 = vmatprep.subr.mxu0 0.0
      %1232 = vmatpush1.msra.mxu0 0.0
      %1233 = vmatprep.subr.mxu0 0.0
      %1234 = vmatpush1.msra.mxu0 0.0
      %1235 = vmatprep.subr.mxu0 0.0
      %1236 = vmatpush1.msra.mxu0 0.0
      %1237 = vmatprep.subr.mxu0 0.0
      %1238 = vmatpush1.msra.mxu0 0.0
      %1239 = vmatprep.subr.mxu0 0.0
      %1240 = vmatpush1.msra.mxu0 0.0
      %1241 = vmatprep.subr.mxu0 0.0
      %1242 = vmatpush1.msra.mxu0 0.0
      %1243 = vmatprep.subr.mxu0 0.0
      %1244 = vmatpush1.msra.mxu0 0.0
      %1245 = vmatprep.subr.mxu0 0.0
      %1246 = vmatpush1.msra.mxu0 0.0
      %1247 = vmatprep.subr.mxu0 0.0
      %1248 = vmatpush1.msra.mxu0 0.0
      %1249 = vmatprep.subr.mxu0 0.0
      %1250 = vmatpush1.msra.mxu0 0.0
      %1251 = vmatprep.subr.mxu0 0.0
      %1252 = vmatpush1.msra.mxu0 0.0
      %1253 = vmatprep.subr.mxu0 0.0
      %1254 = vmatpush1.msra.mxu0 0.0
      %1255 = vmatprep.subr.mxu0 0.0
      %1256 = vmatpush1.msra.mxu0 0.0
      %1257 = vmatprep.subr.mxu0 0.0
      %1258 = vmatpush1.msra.mxu0 0.0
      %1259 = vmatprep.subr.mxu0 0.0
      %1260 = vmatpush1.msra.mxu0 0.0
      %1261 = vmatprep.subr.mxu0 0.0
      %1262 = vmatpush1.msra.mxu0 0.0
      %1263 = vmatprep.subr.mxu0 0.0
      %1264 = vmatpush1.msra.mxu0 0.0
      %1265 = vmatprep.subr.mxu0 0.0
      %1266 = vmatpush1.msra.mxu0 0.0
      %1267 = vmatprep.subr.mxu0 0.0
      %1268 = vmatpush1.msra.mxu0 0.0
      %1269 = vmatprep.subr.mxu0 0.0
      %1270 = vmatpush1.msra.mxu0 0.0
      %1271 = vmatprep.subr.mxu0 0.0
      %1272 = vmatpush1.msra.mxu0 0.0
      %1273 = vmatprep.subr.mxu0 0.0
      %1274 = vmatpush1.msra.mxu0 0.0
      %1275 = vmatprep.subr.mxu0 0.0
      %1276 = vmatpush1.msra.mxu0 0.0
      %1277 = vmatprep.subr.mxu0 0.0
      %1278 = vmatpush1.msra.mxu0 0.0
      %1279 = vmatprep.mubr.f32.mxu0 0.0
      %1280 = vmatmul.mubr.f32.gmra.mrb[0].mxu0 %v772
      %v1281 = vpop.f32.mrb[0].mxu0
      %v1282 = vadd.f32 0.0, %v1281
      %v1283 = vpop.f32.mrb[0].mxu0
      %1284 = vmatprep.mubr.f32.mxu0 0.0
      %1285 = vmatmul.mubr.f32.gmra.mrb[0].mxu0 %v775
      %v1286 = vpop.f32.mrb[0].mxu0
      %v1287 = vadd.f32 0.0, %v1286
      %v1288 = vpop.f32.mrb[0].mxu0
      %1289 = vdwg.mxu0
      %v1290 = vadd.f32 %v1207, %v1282
      %v1291 = vadd.f32 %v1212, %v1287
      %v1292 = vld [vmem:[%s4] sm:$0x1]
      %v1294 = vlaneseq
      %v1295 = vshrl.u32 %v1294, 7
      %v1296 = vsub.s32 0, %v1295
      %v1297 = vrot.slane %v1292, %v1296
      %v1299 = vadd.f32 %v1290, %v1297
      %v1300 = vadd.f32 %v1291, %v1297
      %v1301 = vmax.f32 %v1299, 0.0
      %v1302 = vmax.f32 %v1300, 0.0
      %1303 = vst [vmem:[%s420] sm:$0xff] %v1301
      %1304 = vst [vmem:[%s420 + $0x8] sm:$0xff] %v1302
      %v1305 = vld [vmem:[%s7] sm:$0xff]
      %v1307 = vsel %vm689, %v1305, 0
      %1309 = vmatprep.subr.mxu0 0.0
      %1310 = vmatpush1.msra.mxu0 %v1301
      %1311 = vmatprep.subr.mxu0 0.0
      %1312 = vmatpush1.msra.mxu0 %v1302
      %1313 = vmatprep.subr.mxu0 0.0
      %1314 = vmatpush1.msra.mxu0 0.0
      %1315 = vmatprep.subr.mxu0 0.0
      %1316 = vmatpush1.msra.mxu0 0.0
      %1317 = vmatprep.subr.mxu0 0.0
      %1318 = vmatpush1.msra.mxu0 0.0
      %1319 = vmatprep.subr.mxu0 0.0
      %1320 = vmatpush1.msra.mxu0 0.0
      %1321 = vmatprep.subr.mxu0 0.0
      %1322 = vmatpush1.msra.mxu0 0.0
      %1323 = vmatprep.subr.mxu0 0.0
      %1324 = vmatpush1.msra.mxu0 0.0
      %1325 = vmatprep.subr.mxu0 0.0
      %1326 = vmatpush1.msra.mxu0 0.0
      %1327 = vmatprep.subr.mxu0 0.0
      %1328 = vmatpush1.msra.mxu0 0.0
      %1329 = vmatprep.subr.mxu0 0.0
      %1330 = vmatpush1.msra.mxu0 0.0
      %1331 = vmatprep.subr.mxu0 0.0
      %1332 = vmatpush1.msra.mxu0 0.0
      %1333 = vmatprep.subr.mxu0 0.0
      %1334 = vmatpush1.msra.mxu0 0.0
      %1335 = vmatprep.subr.mxu0 0.0
      %1336 = vmatpush1.msra.mxu0 0.0
      %1337 = vmatprep.subr.mxu0 0.0
      %1338 = vmatpush1.msra.mxu0 0.0
      %1339 = vmatprep.subr.mxu0 0.0
      %1340 = vmatpush1.msra.mxu0 0.0
      %1341 = vmatprep.subr.mxu0 0.0
      %1342 = vmatpush1.msra.mxu0 0.0
      %1343 = vmatprep.subr.mxu0 0.0
      %1344 = vmatpush1.msra.mxu0 0.0
      %1345 = vmatprep.subr.mxu0 0.0
      %1346 = vmatpush1.msra.mxu0 0.0
      %1347 = vmatprep.subr.mxu0 0.0
      %1348 = vmatpush1.msra.mxu0 0.0
      %1349 = vmatprep.subr.mxu0 0.0
      %1350 = vmatpush1.msra.mxu0 0.0
      %1351 = vmatprep.subr.mxu0 0.0
      %1352 = vmatpush1.msra.mxu0 0.0
      %1353 = vmatprep.subr.mxu0 0.0
      %1354 = vmatpush1.msra.mxu0 0.0
      %1355 = vmatprep.subr.mxu0 0.0
      %1356 = vmatpush1.msra.mxu0 0.0
      %1357 = vmatprep.subr.mxu0 0.0
      %1358 = vmatpush1.msra.mxu0 0.0
      %1359 = vmatprep.subr.mxu0 0.0
      %1360 = vmatpush1.msra.mxu0 0.0
      %1361 = vmatprep.subr.mxu0 0.0
      %1362 = vmatpush1.msra.mxu0 0.0
      %1363 = vmatprep.subr.mxu0 0.0
      %1364 = vmatpush1.msra.mxu0 0.0
      %1365 = vmatprep.subr.mxu0 0.0
      %1366 = vmatpush1.msra.mxu0 0.0
      %1367 = vmatprep.subr.mxu0 0.0
      %1368 = vmatpush1.msra.mxu0 0.0
      %1369 = vmatprep.subr.mxu0 0.0
      %1370 = vmatpush1.msra.mxu0 0.0
      %1371 = vmatprep.subr.mxu0 0.0
      %1372 = vmatpush1.msra.mxu0 0.0
      %1373 = vmatprep.mubr.f32.mxu0 0.0
      %1374 = vmatmul.mubr.f32.gmra.mrb[0].mxu0 %v1307
      %v1375 = vpop.f32.mrb[0].mxu0
      %v1376 = vadd.f32 0.0, %v1375
      %v1377 = vpop.f32.mrb[0].mxu0
      %1378 = vdwg.mxu0
      %v1379 = vld [vmem:[%s8] sm:$0xff]
      %v1381 = vsel %vm689, %v1379, 0
      %1383 = vmatprep.subr.mxu0 0.0
      %1384 = vmatpush1.msra.mxu0 %v1301
      %1385 = vmatprep.subr.mxu0 0.0
      %1386 = vmatpush1.msra.mxu0 %v1302
      %1387 = vmatprep.subr.mxu0 0.0
      %1388 = vmatpush1.msra.mxu0 0.0
      %1389 = vmatprep.subr.mxu0 0.0
      %1390 = vmatpush1.msra.mxu0 0.0
      %1391 = vmatprep.subr.mxu0 0.0
      %1392 = vmatpush1.msra.mxu0 0.0
      %1393 = vmatprep.subr.mxu0 0.0
      %1394 = vmatpush1.msra.mxu0 0.0
      %1395 = vmatprep.subr.mxu0 0.0
      %1396 = vmatpush1.msra.mxu0 0.0
      %1397 = vmatprep.subr.mxu0 0.0
      %1398 = vmatpush1.msra.mxu0 0.0
      %1399 = vmatprep.subr.mxu0 0.0
      %1400 = vmatpush1.msra.mxu0 0.0
      %1401 = vmatprep.subr.mxu0 0.0
      %1402 = vmatpush1.msra.mxu0 0.0
      %1403 = vmatprep.subr.mxu0 0.0
      %1404 = vmatpush1.msra.mxu0 0.0
      %1405 = vmatprep.subr.mxu0 0.0
      %1406 = vmatpush1.msra.mxu0 0.0
      %1407 = vmatprep.subr.mxu0 0.0
      %1408 = vmatpush1.msra.mxu0 0.0
      %1409 = vmatprep.subr.mxu0 0.0
      %1410 = vmatpush1.msra.mxu0 0.0
      %1411 = vmatprep.subr.mxu0 0.0
      %1412 = vmatpush1.msra.mxu0 0.0
      %1413 = vmatprep.subr.mxu0 0.0
      %1414 = vmatpush1.msra.mxu0 0.0
      %1415 = vmatprep.subr.mxu0 0.0
      %1416 = vmatpush1.msra.mxu0 0.0
      %1417 = vmatprep.subr.mxu0 0.0
      %1418 = vmatpush1.msra.mxu0 0.0
      %1419 = vmatprep.subr.mxu0 0.0
      %1420 = vmatpush1.msra.mxu0 0.0
      %1421 = vmatprep.subr.mxu0 0.0
      %1422 = vmatpush1.msra.mxu0 0.0
      %1423 = vmatprep.subr.mxu0 0.0
      %1424 = vmatpush1.msra.mxu0 0.0
      %1425 = vmatprep.subr.mxu0 0.0
      %1426 = vmatpush1.msra.mxu0 0.0
      %1427 = vmatprep.subr.mxu0 0.0
      %1428 = vmatpush1.msra.mxu0 0.0
      %1429 = vmatprep.subr.mxu0 0.0
      %1430 = vmatpush1.msra.mxu0 0.0
      %1431 = vmatprep.subr.mxu0 0.0
      %1432 = vmatpush1.msra.mxu0 0.0
      %1433 = vmatprep.subr.mxu0 0.0
      %1434 = vmatpush1.msra.mxu0 0.0
      %1435 = vmatprep.subr.mxu0 0.0
      %1436 = vmatpush1.msra.mxu0 0.0
      %1437 = vmatprep.subr.mxu0 0.0
      %1438 = vmatpush1.msra.mxu0 0.0
      %1439 = vmatprep.subr.mxu0 0.0
      %1440 = vmatpush1.msra.mxu0 0.0
      %1441 = vmatprep.subr.mxu0 0.0
      %1442 = vmatpush1.msra.mxu0 0.0
      %1443 = vmatprep.subr.mxu0 0.0
      %1444 = vmatpush1.msra.mxu0 0.0
      %1445 = vmatprep.subr.mxu0 0.0
      %1446 = vmatpush1.msra.mxu0 0.0
      %1447 = vmatprep.mubr.f32.mxu0 0.0
      %1448 = vmatmul.mubr.f32.gmra.mrb[0].mxu0 %v1381
      %v1449 = vpop.f32.mrb[0].mxu0
      %v1450 = vadd.f32 0.0, %v1449
      %v1451 = vpop.f32.mrb[0].mxu0
      %1452 = vdwg.mxu0
      %v1453 = vmax.f32 %v1376, %v1450
      %v1454 = vld [vmem:[%s9] sm:$0xff]
      %v1455 = vld [vmem:[%s9 + $0x8] sm:$0xff]
      %v1456 = vld [vmem:[%s9 + $0x10] sm:$0xff]
      %v1457 = vld [vmem:[%s9 + $0x18] sm:$0xff]
      %v1458 = vld [vmem:[%s9 + $0x20] sm:$0xff]
      %v1459 = vld [vmem:[%s9 + $0x28] sm:$0xff]
      %v1460 = vld [vmem:[%s9 + $0x30] sm:$0xff]
      %v1461 = vld [vmem:[%s9 + $0x38] sm:$0xff]
      %v1462 = vld [vmem:[%s9 + $0x40] sm:$0xff]
      %v1463 = vld [vmem:[%s9 + $0x48] sm:$0xff]
      %v1464 = vld [vmem:[%s9 + $0x50] sm:$0xff]
      %v1465 = vld [vmem:[%s9 + $0x58] sm:$0xff]
      %v1466 = vld [vmem:[%s9 + $0x60] sm:$0xff]
      %v1467 = vld [vmem:[%s9 + $0x68] sm:$0xff]
      %v1468 = vld [vmem:[%s9 + $0x70] sm:$0xff]
      %v1469 = vld [vmem:[%s9 + $0x78] sm:$0xff]
      %1470 = vmatprep.subr.mxu0 0.0
      %1471 = vmatpush1.msra.mxu0 %v1454
      %1472 = vmatprep.subr.mxu0 0.0
      %1473 = vmatpush1.msra.mxu0 %v1455
      %1474 = vmatprep.subr.mxu0 0.0
      %1475 = vmatpush1.msra.mxu0 %v1456
      %1476 = vmatprep.subr.mxu0 0.0
      %1477 = vmatpush1.msra.mxu0 %v1457
      %1478 = vmatprep.subr.mxu0 0.0
      %1479 = vmatpush1.msra.mxu0 %v1458
      %1480 = vmatprep.subr.mxu0 0.0
      %1481 = vmatpush1.msra.mxu0 %v1459
      %1482 = vmatprep.subr.mxu0 0.0
      %1483 = vmatpush1.msra.mxu0 %v1460
      %1484 = vmatprep.subr.mxu0 0.0
      %1485 = vmatpush1.msra.mxu0 %v1461
      %1486 = vmatprep.subr.mxu0 0.0
      %1487 = vmatpush1.msra.mxu0 %v1462
      %1488 = vmatprep.subr.mxu0 0.0
      %1489 = vmatpush1.msra.mxu0 %v1463
      %1490 = vmatprep.subr.mxu0 0.0
      %1491 = vmatpush1.msra.mxu0 %v1464
      %1492 = vmatprep.subr.mxu0 0.0
      %1493 = vmatpush1.msra.mxu0 %v1465
      %1494 = vmatprep.subr.mxu0 0.0
      %1495 = vmatpush1.msra.mxu0 %v1466
      %1496 = vmatprep.subr.mxu0 0.0
      %1497 = vmatpush1.msra.mxu0 %v1467
      %1498 = vmatprep.subr.mxu0 0.0
      %1499 = vmatpush1.msra.mxu0 %v1468
      %1500 = vmatprep.subr.mxu0 0.0
      %1501 = vmatpush1.msra.mxu0 %v1469
      %1502 = vmatprep.subr.mxu0 0.0
      %1503 = vmatpush1.msra.mxu0 0.0
      %1504 = vmatprep.subr.mxu0 0.0
      %1505 = vmatpush1.msra.mxu0 0.0
      %1506 = vmatprep.subr.mxu0 0.0
      %1507 = vmatpush1.msra.mxu0 0.0
      %1508 = vmatprep.subr.mxu0 0.0
      %1509 = vmatpush1.msra.mxu0 0.0
      %1510 = vmatprep.subr.mxu0 0.0
      %1511 = vmatpush1.msra.mxu0 0.0
      %1512 = vmatprep.subr.mxu0 0.0
      %1513 = vmatpush1.msra.mxu0 0.0
      %1514 = vmatprep.subr.mxu0 0.0
      %1515 = vmatpush1.msra.mxu0 0.0
      %1516 = vmatprep.subr.mxu0 0.0
      %1517 = vmatpush1.msra.mxu0 0.0
      %1518 = vmatprep.subr.mxu0 0.0
      %1519 = vmatpush1.msra.mxu0 0.0
      %1520 = vmatprep.subr.mxu0 0.0
      %1521 = vmatpush1.msra.mxu0 0.0
      %1522 = vmatprep.subr.mxu0 0.0
      %1523 = vmatpush1.msra.mxu0 0.0
      %1524 = vmatprep.subr.mxu0 0.0
      %1525 = vmatpush1.msra.mxu0 0.0
      %1526 = vmatprep.subr.mxu0 0.0
      %1527 = vmatpush1.msra.mxu0 0.0
      %1528 = vmatprep.subr.mxu0 0.0
      %1529 = vmatpush1.msra.mxu0 0.0
      %1530 = vmatprep.subr.mxu0 0.0
      %1531 = vmatpush1.msra.mxu0 0.0
      %1532 = vmatprep.subr.mxu0 0.0
      %1533 = vmatpush1.msra.mxu0 0.0
      %1534 = vmatprep.mubr.f32.mxu0 0.0
      %1535 = vmatmul.mubr.f32.gmra.mrb[0].mxu0 %v1453
      %v1536 = vpop.f32.mrb[0].mxu0
      %v1537 = vadd.f32 0.0, %v1536
      %v1538 = vpop.f32.mrb[0].mxu0
      %1539 = vdwg.mxu0
      %v1540 = vld [vmem:[%s10] sm:$0xff]
      %v1541 = vld [vmem:[%s10 + $0x8] sm:$0xff]
      %v1542 = vld [vmem:[%s10 + $0x10] sm:$0xff]
      %v1543 = vld [vmem:[%s10 + $0x18] sm:$0xff]
      %v1544 = vld [vmem:[%s10 + $0x20] sm:$0xff]
      %v1545 = vld [vmem:[%s10 + $0x28] sm:$0xff]
      %v1546 = vld [vmem:[%s10 + $0x30] sm:$0xff]
      %v1547 = vld [vmem:[%s10 + $0x38] sm:$0xff]
      %v1548 = vld [vmem:[%s10 + $0x40] sm:$0xff]
      %v1549 = vld [vmem:[%s10 + $0x48] sm:$0xff]
      %v1550 = vld [vmem:[%s10 + $0x50] sm:$0xff]
      %v1551 = vld [vmem:[%s10 + $0x58] sm:$0xff]
      %v1552 = vld [vmem:[%s10 + $0x60] sm:$0xff]
      %v1553 = vld [vmem:[%s10 + $0x68] sm:$0xff]
      %v1554 = vld [vmem:[%s10 + $0x70] sm:$0xff]
      %v1555 = vld [vmem:[%s10 + $0x78] sm:$0xff]
      %1556 = vmatprep.subr.mxu0 0.0
      %1557 = vmatpush1.msra.mxu0 %v1540
      %1558 = vmatprep.subr.mxu0 0.0
      %1559 = vmatpush1.msra.mxu0 %v1541
      %1560 = vmatprep.subr.mxu0 0.0
      %1561 = vmatpush1.msra.mxu0 %v1542
      %1562 = vmatprep.subr.mxu0 0.0
      %1563 = vmatpush1.msra.mxu0 %v1543
      %1564 = vmatprep.subr.mxu0 0.0
      %1565 = vmatpush1.msra.mxu0 %v1544
      %1566 = vmatprep.subr.mxu0 0.0
      %1567 = vmatpush1.msra.mxu0 %v1545
      %1568 = vmatprep.subr.mxu0 0.0
      %1569 = vmatpush1.msra.mxu0 %v1546
      %1570 = vmatprep.subr.mxu0 0.0
      %1571 = vmatpush1.msra.mxu0 %v1547
      %1572 = vmatprep.subr.mxu0 0.0
      %1573 = vmatpush1.msra.mxu0 %v1548
      %1574 = vmatprep.subr.mxu0 0.0
      %1575 = vmatpush1.msra.mxu0 %v1549
      %1576 = vmatprep.subr.mxu0 0.0
      %1577 = vmatpush1.msra.mxu0 %v1550
      %1578 = vmatprep.subr.mxu0 0.0
      %1579 = vmatpush1.msra.mxu0 %v1551
      %1580 = vmatprep.subr.mxu0 0.0
      %1581 = vmatpush1.msra.mxu0 %v1552
      %1582 = vmatprep.subr.mxu0 0.0
      %1583 = vmatpush1.msra.mxu0 %v1553
      %1584 = vmatprep.subr.mxu0 0.0
      %1585 = vmatpush1.msra.mxu0 %v1554
      %1586 = vmatprep.subr.mxu0 0.0
      %1587 = vmatpush1.msra.mxu0 %v1555
      %1588 = vmatprep.subr.mxu0 0.0
      %1589 = vmatpush1.msra.mxu0 0.0
      %1590 = vmatprep.subr.mxu0 0.0
      %1591 = vmatpush1.msra.mxu0 0.0
      %1592 = vmatprep.subr.mxu0 0.0
      %1593 = vmatpush1.msra.mxu0 0.0
      %1594 = vmatprep.subr.mxu0 0.0
      %1595 = vmatpush1.msra.mxu0 0.0
      %1596 = vmatprep.subr.mxu0 0.0
      %1597 = vmatpush1.msra.mxu0 0.0
      %1598 = vmatprep.subr.mxu0 0.0
      %1599 = vmatpush1.msra.mxu0 0.0
      %1600 = vmatprep.subr.mxu0 0.0
      %1601 = vmatpush1.msra.mxu0 0.0
      %1602 = vmatprep.subr.mxu0 0.0
      %1603 = vmatpush1.msra.mxu0 0.0
      %1604 = vmatprep.subr.mxu0 0.0
      %1605 = vmatpush1.msra.mxu0 0.0
      %1606 = vmatprep.subr.mxu0 0.0
      %1607 = vmatpush1.msra.mxu0 0.0
      %1608 = vmatprep.subr.mxu0 0.0
      %1609 = vmatpush1.msra.mxu0 0.0
      %1610 = vmatprep.subr.mxu0 0.0
      %1611 = vmatpush1.msra.mxu0 0.0
      %1612 = vmatprep.subr.mxu0 0.0
      %1613 = vmatpush1.msra.mxu0 0.0
      %1614 = vmatprep.subr.mxu0 0.0
      %1615 = vmatpush1.msra.mxu0 0.0
      %1616 = vmatprep.subr.mxu0 0.0
      %1617 = vmatpush1.msra.mxu0 0.0
      %1618 = vmatprep.subr.mxu0 0.0
      %1619 = vmatpush1.msra.mxu0 0.0
      %1620 = vmatprep.mubr.f32.mxu0 0.0
      %1621 = vmatmul.mubr.f32.gmra.mrb[0].mxu0 %v1453
      %v1622 = vpop.f32.mrb[0].mxu0
      %v1623 = vadd.f32 0.0, %v1622
      %v1624 = vpop.f32.mrb[0].mxu0
      %1625 = vdwg.mxu0
      %v1626 = vmax.f32 %v1537, %v1623
      %1627 = vst.msk [vmem:[%s424] sm:$0xff] %vm439, %v1626
      %p1628 = scmp.lt.s32.totalorder %s24, 1
      %s1629 = scalar_select %p1628, %s24, 1
      %s1630 = smul.addr %s1629, 2
      %s1631 = smul.addr %s1630, 8
      %s1632 = scalar_lea.vmem %s11, %s1631
      %p1633 = scmp.lt.s32.totalorder %s24, 1
      %s1634 = scalar_select %p1633, %s24, 1
      %s1635 = smul.addr %s1634, 8
      %s1636 = scalar_lea.vmem %s12, %s1635
      // Predicated region
      $region65: #{down_conv.1} parent=63 // pred_check
        %p1637 = pneg %p278
      $region66: #{down_conv.1} parent=63 // pred_check_branch
        %1639 = sbr.rel (%p1637) target = $region68
      $region67: #{down_conv.1} parent=63 // pred_region
        _
      $region68: #{down_conv.1} parent=63 // pred_fallthru
        _
      // Predicated region
      $region69: #{down_conv.1} parent=63 // pred_check
        %p1640 = pneg %p304
      $region70: #{down_conv.1} parent=63 // pred_check_branch
        %1642 = sbr.rel (%p1640) target = $region72
      $region71: #{down_conv.1} parent=63 // pred_region
        _
      $region72: #{down_conv.1} parent=63 // pred_fallthru
        _
    $region64: #{down_conv.1} parent=5 // pred_fallthru
      _
    %p1643 = scmp.le.s32.totalorder 2, %s19
    // Predicated region
    $region73: #{down_conv.1} parent=5 // pred_check
      %p1644 = pneg %p1643
    $region74: #{down_conv.1} parent=5 // pred_check_branch
      %1646 = sbr.rel (%p1644) target = $region76
    $region75: #{down_conv.1} parent=5 // pred_region
      %s1647 = ssub.s32 %s19, 2
      // Predicated region
      $region77: #{down_conv.1} parent=75 // pred_check
        %p1648 = pneg %p284
      $region78: #{down_conv.1} parent=75 // pred_check_branch
        %1650 = sbr.rel (%p1648) target = $region80
      $region79: #{down_conv.1} parent=75 // pred_region
        %p1651 = scmp.lt.s32.totalorder %s25, 1
        %s1652 = scalar_select %p1651, %s25, 1
        %s1653 = smul.addr %s1652, 2
        %s1654 = smul.addr %s1653, 8
        %s1655 = scalar_lea.vmem %s11, %s1654
      $region80: #{down_conv.1} parent=75 // pred_fallthru
        _
      // Predicated region
      $region81: #{down_conv.1} parent=75 // pred_check
        %p1656 = pneg %p310
      $region82: #{down_conv.1} parent=75 // pred_check_branch
        %1658 = sbr.rel (%p1656) target = $region84
      $region83: #{down_conv.1} parent=75 // pred_region
        %p1659 = scmp.lt.s32.totalorder %s25, 1
        %s1660 = scalar_select %p1659, %s25, 1
        %s1661 = smul.addr %s1660, 8
        %s1662 = scalar_lea.vmem %s12, %s1661
      $region84: #{down_conv.1} parent=75 // pred_fallthru
        _
    $region76: #{down_conv.1} parent=5 // pred_fallthru
      _
  $region6: #{down_conv.1} parent=0 // loop_footer
    %s23 = sadd.s32 1, %s19
  $region7: #{down_conv.1} parent=0 // loop_footer_branch
    %18 = sbr.rel target = $region3
  $region8: #{down_conv.1} parent=0 // loop_exit
    _

</llo_original>
